<compile_context>
chip_gen: v5e
topology: v5e:2x2
jax: 0.10.0
libtpu: 0.0.40
codegen_flags: <defaults>
</compile_context>

<pallas_src>
import math
import functools

import jax
import jax.numpy as jnp
from jax import lax
from jax.experimental import pallas as pl
from jax.experimental.pallas import tpu as pltpu

EPS = 1e-6          # Norm epsilon (matches the reference Norm class)
FF_HIDDEN = 64      # FeedForward hidden dim (reference default 2048; small here)


# ----------------------------------------------------------------------------
# Shared in-kernel helpers
# ----------------------------------------------------------------------------

def _layer_norm(x, alpha, bias):
    """torch-style Norm: alpha * (x - mean) / (std_ddof1 + eps) + bias."""
    d = x.shape[-1]
    mean = jnp.mean(x, axis=-1, keepdims=True)
    var = jnp.sum((x - mean) ** 2, axis=-1, keepdims=True) / (d - 1)  # ddof=1
    return alpha * (x - mean) / (jnp.sqrt(var) + EPS) + bias


def _row_tile(m, target=1024):
    """Largest row tile <= target that divides m (keeps (8,128) rules happy)."""
    if m <= target:
        return m
    t = (target // 8) * 8
    while t >= 8:
        if m % t == 0:
            return t
        t -= 8
    return m


def _const_spec(a):
    """Full-array block that stays at block (0,...,0) for every grid step."""
    nd = a.ndim
    return pl.BlockSpec(a.shape, lambda *_: (0,) * nd)


# ----------------------------------------------------------------------------
# Kernel 1: fused LayerNorm-1 + QKV + E/F + attention + out-proj + residual
# ----------------------------------------------------------------------------

def _mha_kernel(x_ref, ln_a_ref, ln_b_ref, wqkv_ref, bqkv_ref, we_ref, be_ref,
                wf_ref, bf_ref, wo_ref, bo_ref, mbias_ref, o_ref,
                *, num_heads, dim_k, lin_dim, dqk, use_linear):
    x = x_ref[0]                                              # (S, E) f32
    x2 = _layer_norm(x, ln_a_ref[...], ln_b_ref[...])         # f32 (VPU path)

    # Fused Q/K/V projection: bf16 MXU operands, f32 accumulation.
    qkv = jnp.dot(x2.astype(jnp.bfloat16), wqkv_ref[...],
                  preferred_element_type=jnp.float32) + bqkv_ref[...]
    q = qkv[:, 0 * dqk:1 * dqk]
    k = qkv[:, 1 * dqk:2 * dqk]
    v = qkv[:, 2 * dqk:3 * dqk]

    q_bf = q.astype(jnp.bfloat16)
    k_bf = k.astype(jnp.bfloat16)
    v_bf = v.astype(jnp.bfloat16)

    mbias = mbias_ref[0]                                      # (1, S) additive 0/-1e9
    scale = 1.0 / math.sqrt(dim_k)

    if use_linear:
        # E/F projections of the projected k / v (reference semantics).
        e = jnp.dot(k_bf, we_ref[...], preferred_element_type=jnp.float32) + be_ref[...]
        f = jnp.dot(v_bf, wf_ref[...], preferred_element_type=jnp.float32) + bf_ref[...]
        e_bf = e.astype(jnp.bfloat16)                         # (S, L*H)
        f_bf = f.astype(jnp.bfloat16)
        mbias_lin = mbias[:, :lin_dim]                        # hoisted out of head loop

    heads_out = []
    for h in range(num_heads):                                # static unrolled head loop
        q_h = q_bf[:, h * dim_k:(h + 1) * dim_k]              # (S, dk) bf16
        k_h = k_bf[:, h * dim_k:(h + 1) * dim_k]
        v_h = v_bf[:, h * dim_k:(h + 1) * dim_k]
        if use_linear:
            e_h = e_bf[:, h * lin_dim:(h + 1) * lin_dim]      # (S, L) bf16
            f_h = f_bf[:, h * lin_dim:(h + 1) * lin_dim]
            # kp = e^T @ k : contract over the sequence axis (no materialized .T)
            kp = lax.dot_general(e_h, k_h, (((0,), (0,)), ((), ())),
                                 preferred_element_type=jnp.float32)       # (L, dk)
            # scores = q @ kp^T (rhs-transposed dot_general)
            s = lax.dot_general(q_h, kp.astype(jnp.bfloat16),
                                (((1,), (1,)), ((), ())),
                                preferred_element_type=jnp.float32) * scale  # (S, L)
            s = s + mbias_lin                                 # mask.narrow parity
            # ctx = f^T @ v : contract over the sequence axis
            ctx = lax.dot_general(f_h, v_h, (((0,), (0,)), ((), ())),
                                  preferred_element_type=jnp.float32)      # (L, dk)
            ctx = ctx.astype(jnp.bfloat16)
        else:
            # Basic softmax attention branch (when linear_dim >= seq_len).
            s = lax.dot_general(q_h, k_h, (((1,), (1,)), ((), ())),
                                preferred_element_type=jnp.float32) * scale  # (S, S)
            s = s + mbias
            ctx = v_h

        # Softmax in f32, exact normalization (numeric parity with reference).
        s = s - jnp.max(s, axis=-1, keepdims=True)
        p = jnp.exp(s)
        p = p / jnp.sum(p, axis=-1, keepdims=True)
        attn_h = jnp.dot(p.astype(jnp.bfloat16), ctx,
                         preferred_element_type=jnp.float32)               # (S, dk)
        heads_out.append(attn_h)

    # Fused output projection: one (S,dqk)@(dqk,E) matmul instead of H thin ones.
    concat = jnp.concatenate(heads_out, axis=-1)              # (S, dqk) f32
    out = jnp.dot(concat.astype(jnp.bfloat16), wo_ref[...],
                  preferred_element_type=jnp.float32) + bo_ref[...]
    o_ref[0] = x + out                                        # residual fused


def mha_block(x, p, mask_bias, num_heads, dim_k, lin_dim):
    B, S, E = x.shape
    dqk = dim_k * num_heads
    LH = lin_dim * num_heads
    use_linear = lin_dim < S

    ln_a = p["n1_a"].reshape(1, E)
    ln_b = p["n1_b"].reshape(1, E)
    b_qkv = p["b_qkv"].reshape(1, 3 * dqk)
    be = p["be"].reshape(1, LH)
    bf = p["bf"].reshape(1, LH)
    bo = p["bo"].reshape(1, E)

    # Pre-cast MXU weights to bf16 ONCE in the wrapper (halves VMEM residency).
    w_qkv = p["w_qkv"].astype(jnp.bfloat16)
    we = p["we"].astype(jnp.bfloat16)
    wf = p["wf"].astype(jnp.bfloat16)
    wo = p["wo"].astype(jnp.bfloat16)

    kernel = functools.partial(_mha_kernel, num_heads=num_heads, dim_k=dim_k,
                               lin_dim=lin_dim, dqk=dqk, use_linear=use_linear)
    return pl.pallas_call(
        kernel,
        out_shape=jax.ShapeDtypeStruct((B, S, E), jnp.float32),
        grid=(B,),
        in_specs=[
            pl.BlockSpec((1, S, E), lambda b: (b, 0, 0)),     # x (residual input)
            _const_spec(ln_a), _const_spec(ln_b),             # LayerNorm-1 params
            _const_spec(w_qkv), _const_spec(b_qkv),           # fused QKV weights
            _const_spec(we), _const_spec(be),                 # E projection
            _const_spec(wf), _const_spec(bf),                 # F projection
            _const_spec(wo), _const_spec(bo),                 # output projection
            pl.BlockSpec((1, 1, S), lambda b: (b, 0, 0)),     # additive mask bias
        ],
        out_specs=pl.BlockSpec((1, S, E), lambda b: (b, 0, 0)),
        compiler_params=pltpu.CompilerParams(
            dimension_semantics=("parallel",),
            vmem_limit_bytes=64 * 1024 * 1024),
    )(x, ln_a, ln_b, w_qkv, b_qkv, we, be, wf, bf, wo, bo, mask_bias)


# ----------------------------------------------------------------------------
# Kernel 2: fused LayerNorm-2 + FeedForward (Linear-ReLU-Linear) + residual
# ----------------------------------------------------------------------------

def _ff_kernel(x_ref, a_ref, b_ref, w1_ref, b1_ref, w2_ref, b2_ref, o_ref):
    x = x_ref[...]
    x2 = _layer_norm(x, a_ref[...], b_ref[...])               # f32
    h = jnp.dot(x2.astype(jnp.bfloat16), w1_ref[...],
                preferred_element_type=jnp.float32) + b1_ref[...]
    h = jnp.maximum(h, 0.0)
    y = jnp.dot(h.astype(jnp.bfloat16), w2_ref[...],
                preferred_element_type=jnp.float32) + b2_ref[...]
    o_ref[...] = x + y                                        # residual fused


def ff_block(x, p):
    B, S, E = x.shape
    M = B * S
    TM = _row_tile(M, target=1024)    # mem-bound: big tiles amortize grid overhead
    F = p["ff_w1"].shape[1]
    ln_a = p["n2_a"].reshape(1, E)
    ln_b = p["n2_b"].reshape(1, E)
    b1 = p["ff_b1"].reshape(1, F)
    b2 = p["ff_b2"].reshape(1, E)
    w1 = p["ff_w1"].astype(jnp.bfloat16)
    w2 = p["ff_w2"].astype(jnp.bfloat16)

    out = pl.pallas_call(
        _ff_kernel,
        out_shape=jax.ShapeDtypeStruct((M, E), jnp.float32),
        grid=(M // TM,),
        in_specs=[pl.BlockSpec((TM, E), lambda i: (i, 0)),
                  _const_spec(ln_a), _const_spec(ln_b),
                  _const_spec(w1), _const_spec(b1),
                  _const_spec(w2), _const_spec(b2)],
        out_specs=pl.BlockSpec((TM, E), lambda i: (i, 0)),
        compiler_params=pltpu.CompilerParams(dimension_semantics=("parallel",)),
    )(x.reshape(M, E), ln_a, ln_b, w1, b1, w2, b2)
    return out.reshape(B, S, E)


# ----------------------------------------------------------------------------
# Kernel 3: final LayerNorm
# ----------------------------------------------------------------------------

def _norm_kernel(x_ref, a_ref, b_ref, o_ref):
    o_ref[...] = _layer_norm(x_ref[...], a_ref[...], b_ref[...])


def final_norm(x, alpha, bias):
    B, S, E = x.shape
    M = B * S
    TM = _row_tile(M, target=1024)
    a2 = alpha.reshape(1, E)
    b2 = bias.reshape(1, E)
    out = pl.pallas_call(
        _norm_kernel,
        out_shape=jax.ShapeDtypeStruct((M, E), jnp.float32),
        grid=(M // TM,),
        in_specs=[pl.BlockSpec((TM, E), lambda i: (i, 0)),
                  _const_spec(a2), _const_spec(b2)],
        out_specs=pl.BlockSpec((TM, E), lambda i: (i, 0)),
        compiler_params=pltpu.CompilerParams(dimension_semantics=("parallel",)),
    )(x.reshape(M, E), a2, b2)
    return out.reshape(B, S, E)


# ----------------------------------------------------------------------------
# Model forward (embedding / PE glue in plain JAX, hot paths in Pallas)
# ----------------------------------------------------------------------------

@functools.partial(jax.jit, static_argnames=("n_layers", "heads", "dim_k", "linear_dim"))
def linformer_encoder_forward(params, tokens, mask, *, n_layers, heads, dim_k,
                              linear_dim):
    B, S = tokens.shape
    E = params["embed"].shape[1]
    # Embedder + PositionalEncoder (gather glue)
    x = params["embed"][tokens] * math.sqrt(E) + params["pe"][:S][None, :, :]
    # Precompute the mask ONCE as an additive bias (0 / -1e9).
    mask_bias = jnp.where(mask == 0.0, -1e9, 0.0).astype(jnp.float32)   # (B,1,S)
    lp = params["layer"]          # get_clones -> identical init, forward-only parity
    for _ in range(n_layers):
        x = mha_block(x, lp, mask_bias, heads, dim_k, linear_dim)
        x = ff_block(x, lp)
    return final_norm(x, params["norm_a"], params["norm_b"])


# ----------------------------------------------------------------------------
# Deterministic parameter construction
# ----------------------------------------------------------------------------

def make_params(key, vocab_size, emb_dim, linear_dim, heads, max_seq):
    dim_k = emb_dim // heads
    dqk = dim_k * heads
    ks = jax.random.split(key, 8)

    def lin(k, fan_in, fan_out):
        w = jax.random.normal(k, (fan_in, fan_out), jnp.float32) * 0.05
        return w, jnp.zeros((fan_out,), jnp.float32)

    w_qkv, b_qkv = lin(ks[0], emb_dim, 3 * dqk)               # fused Wq|Wk|Wv
    we, be = lin(ks[1], dqk, linear_dim * heads)
    wf, bf = lin(ks[2], dqk, linear_dim * heads)
    wo, bo = lin(ks[3], dqk, emb_dim)
    ff_w1, ff_b1 = lin(ks[4], emb_dim, FF_HIDDEN)
    ff_w2, ff_b2 = lin(ks[5], FF_HIDDEN, emb_dim)

    layer = dict(
        n1_a=jnp.ones((emb_dim,), jnp.float32), n1_b=jnp.zeros((emb_dim,), jnp.float32),
        n2_a=jnp.ones((emb_dim,), jnp.float32), n2_b=jnp.zeros((emb_dim,), jnp.float32),
        w_qkv=w_qkv, b_qkv=b_qkv, we=we, be=be, wf=wf, bf=bf, wo=wo, bo=bo,
        ff_w1=ff_w1, ff_b1=ff_b1, ff_w2=ff_w2, ff_b2=ff_b2,
    )

    embed = jax.random.normal(ks[6], (vocab_size, emb_dim), jnp.float32) * 0.1

    # Positional-encoding table (sin/cos with 2*i and 2*(i+1) exponents)
    pos = jnp.arange(max_seq, dtype=jnp.float32)[:, None]
    i2 = jnp.arange(0, emb_dim, 2, dtype=jnp.float32)[None, :]
    pe_sin = jnp.sin(pos / jnp.power(10000.0, (2.0 * i2) / emb_dim))
    pe_cos = jnp.cos(pos / jnp.power(10000.0, (2.0 * (i2 + 1.0)) / emb_dim))
    pe = jnp.stack([pe_sin, pe_cos], axis=-1).reshape(max_seq, emb_dim)

    return dict(embed=embed, pe=pe, layer=layer,
                norm_a=jnp.ones((emb_dim,), jnp.float32),
                norm_b=jnp.zeros((emb_dim,), jnp.float32))


# ----------------------------------------------------------------------------

if __name__ == "__main__":
    vocab_size, emb_dim, linear_dim, n_layers, heads = 50, 32, 4, 2, 4
    batch, seq = 2, 8

    key = jax.random.PRNGKey(0)
    k_par, k_tok = jax.random.split(key)
    params = make_params(k_par, vocab_size, emb_dim, linear_dim, heads, max_seq=64)

    tokens = jax.random.randint(k_tok, (batch, seq), 0, vocab_size, dtype=jnp.int32)
    source_mask = jnp.ones((batch, 1, seq), jnp.float32).at[1, 0, seq - 1].set(0.0)

    out = linformer_encoder_forward(params, tokens, source_mask,
                                    n_layers=n_layers, heads=heads,
                                    dim_k=emb_dim // heads, linear_dim=linear_dim)
    out = jax.block_until_ready(out)
    assert out.shape == (batch, seq, emb_dim)
    assert bool(jnp.all(jnp.isfinite(out)))
    print("KERNEL_OK")
</pallas_src>

<mosaic_0001>
module attributes {stable_mosaic.version = 11 : i64} {
  func.func @_norm_kernel(%arg0: i32, %arg1: memref<16x32xf32, #tpu.memory_space<vmem>>, %arg2: memref<1x32xf32, #tpu.memory_space<vmem>>, %arg3: memref<1x32xf32, #tpu.memory_space<vmem>>, %arg4: memref<16x32xf32, #tpu.memory_space<vmem>>) attributes {dimension_semantics = [#tpu.dimension_semantics<parallel>], iteration_bounds = array<i64: 1>, scalar_prefetch = 0 : i64, scratch_operands = 0 : i64, tpu.core_type = #tpu.core_type<tc>, window_params = [{transform_indices = @transform_0, window_bounds = array<i64: 16, 32>}, {pipeline_mode = #tpu.pipeline_mode<synchronous>, transform_indices = @transform_1, window_bounds = array<i64: 1, 32>}, {pipeline_mode = #tpu.pipeline_mode<synchronous>, transform_indices = @transform_2, window_bounds = array<i64: 1, 32>}, {transform_indices = @transform_3, window_bounds = array<i64: 16, 32>}]} {
    %c0 = arith.constant 0 : index
    %c0_0 = arith.constant 0 : index
    %0 = vector.load %arg1[%c0, %c0_0] : memref<16x32xf32, #tpu.memory_space<vmem>>, vector<16x32xf32>
    %c0_1 = arith.constant 0 : index
    %c0_2 = arith.constant 0 : index
    %1 = vector.load %arg2[%c0_1, %c0_2] : memref<1x32xf32, #tpu.memory_space<vmem>>, vector<1x32xf32>
    %c0_3 = arith.constant 0 : index
    %c0_4 = arith.constant 0 : index
    %2 = vector.load %arg3[%c0_3, %c0_4] : memref<1x32xf32, #tpu.memory_space<vmem>>, vector<1x32xf32>
    %cst = arith.constant dense<0.000000e+00> : vector<16xf32>
    %3 = vector.multi_reduction <add>, %0, %cst [1] : vector<16x32xf32> to vector<16xf32>
    %4 = vector.shape_cast %3 : vector<16xf32> to vector<16x1xf32>
    %cst_5 = arith.constant 3.200000e+01 : f32
    %5 = vector.broadcast %cst_5 : f32 to vector<16x1xf32>
    %6 = arith.divf %4, %5 : vector<16x1xf32>
    %7 = vector.broadcast %6 : vector<16x1xf32> to vector<16x32xf32>
    %8 = arith.subf %0, %7 : vector<16x32xf32>
    %9 = arith.mulf %8, %8 : vector<16x32xf32>
    %cst_6 = arith.constant dense<0.000000e+00> : vector<16xf32>
    %10 = vector.multi_reduction <add>, %9, %cst_6 [1] : vector<16x32xf32> to vector<16xf32>
    %11 = vector.shape_cast %10 : vector<16xf32> to vector<16x1xf32>
    %cst_7 = arith.constant 3.100000e+01 : f32
    %12 = vector.broadcast %cst_7 : f32 to vector<16x1xf32>
    %13 = arith.divf %11, %12 : vector<16x1xf32>
    %14 = vector.broadcast %6 : vector<16x1xf32> to vector<16x32xf32>
    %15 = arith.subf %0, %14 : vector<16x32xf32>
    %16 = vector.broadcast %1 : vector<1x32xf32> to vector<16x32xf32>
    %17 = arith.mulf %16, %15 : vector<16x32xf32>
    %18 = math.sqrt %13 : vector<16x1xf32>
    %cst_8 = arith.constant 9.99999997E-7 : f32
    %19 = vector.broadcast %cst_8 : f32 to vector<16x1xf32>
    %20 = arith.addf %18, %19 : vector<16x1xf32>
    %21 = vector.broadcast %20 : vector<16x1xf32> to vector<16x32xf32>
    %22 = arith.divf %17, %21 : vector<16x32xf32>
    %23 = vector.broadcast %2 : vector<1x32xf32> to vector<16x32xf32>
    %24 = arith.addf %22, %23 : vector<16x32xf32>
    %c0_9 = arith.constant 0 : index
    %c0_10 = arith.constant 0 : index
    %25 = vector.load %arg4[%c0_9, %c0_10] : memref<16x32xf32, #tpu.memory_space<vmem>>, vector<16x32xf32>
    tpu.vector_store %arg4[%c0_9, %c0_10], %24 {strides = array<i32>} : memref<16x32xf32, #tpu.memory_space<vmem>>, vector<16x32xf32>,
    return
  }
  func.func @transform_0(%arg0: i32) -> (i32, i32) {
    %c0_i32 = arith.constant 0 : i32
    %c0_i32_0 = arith.constant 0 : i32
    return %arg0, %c0_i32 : i32, i32
  }
  func.func @transform_1(%arg0: i32) -> (i32, i32) {
    %c0_i32 = arith.constant 0 : i32
    %c0_i32_0 = arith.constant 0 : i32
    %c0_i32_1 = arith.constant 0 : i32
    return %c0_i32, %c0_i32_0 : i32, i32
  }
  func.func @transform_2(%arg0: i32) -> (i32, i32) {
    %c0_i32 = arith.constant 0 : i32
    %c0_i32_0 = arith.constant 0 : i32
    %c0_i32_1 = arith.constant 0 : i32
    return %c0_i32, %c0_i32_0 : i32, i32
  }
  func.func @transform_3(%arg0: i32) -> (i32, i32) {
    %c0_i32 = arith.constant 0 : i32
    %c0_i32_0 = arith.constant 0 : i32
    return %arg0, %c0_i32 : i32, i32
  }
}

module attributes {stable_mosaic.version = 11 : i64} {
  func.func @_ff_kernel(%arg0: i32, %arg1: memref<16x32xf32, #tpu.memory_space<vmem>>, %arg2: memref<1x32xf32, #tpu.memory_space<vmem>>, %arg3: memref<1x32xf32, #tpu.memory_space<vmem>>, %arg4: memref<32x64xbf16, #tpu.memory_space<vmem>>, %arg5: memref<1x64xf32, #tpu.memory_space<vmem>>, %arg6: memref<64x32xbf16, #tpu.memory_space<vmem>>, %arg7: memref<1x32xf32, #tpu.memory_space<vmem>>, %arg8: memref<16x32xf32, #tpu.memory_space<vmem>>) attributes {dimension_semantics = [#tpu.dimension_semantics<parallel>], iteration_bounds = array<i64: 1>, scalar_prefetch = 0 : i64, scratch_operands = 0 : i64, tpu.core_type = #tpu.core_type<tc>, window_params = [{transform_indices = @transform_0, window_bounds = array<i64: 16, 32>}, {pipeline_mode = #tpu.pipeline_mode<synchronous>, transform_indices = @transform_1, window_bounds = array<i64: 1, 32>}, {pipeline_mode = #tpu.pipeline_mode<synchronous>, transform_indices = @transform_2, window_bounds = array<i64: 1, 32>}, {pipeline_mode = #tpu.pipeline_mode<synchronous>, transform_indices = @transform_3, window_bounds = array<i64: 32, 64>}, {pipeline_mode = #tpu.pipeline_mode<synchronous>, transform_indices = @transform_4, window_bounds = array<i64: 1, 64>}, {pipeline_mode = #tpu.pipeline_mode<synchronous>, transform_indices = @transform_5, window_bounds = array<i64: 64, 32>}, {pipeline_mode = #tpu.pipeline_mode<synchronous>, transform_indices = @transform_6, window_bounds = array<i64: 1, 32>}, {transform_indices = @transform_7, window_bounds = array<i64: 16, 32>}]} {
    %c0 = arith.constant 0 : index
    %c0_0 = arith.constant 0 : index
    %0 = vector.load %arg1[%c0, %c0_0] : memref<16x32xf32, #tpu.memory_space<vmem>>, vector<16x32xf32>
    %c0_1 = arith.constant 0 : index
    %c0_2 = arith.constant 0 : index
    %1 = vector.load %arg2[%c0_1, %c0_2] : memref<1x32xf32, #tpu.memory_space<vmem>>, vector<1x32xf32>
    %c0_3 = arith.constant 0 : index
    %c0_4 = arith.constant 0 : index
    %2 = vector.load %arg3[%c0_3, %c0_4] : memref<1x32xf32, #tpu.memory_space<vmem>>, vector<1x32xf32>
    %cst = arith.constant dense<0.000000e+00> : vector<16xf32>
    %3 = vector.multi_reduction <add>, %0, %cst [1] : vector<16x32xf32> to vector<16xf32>
    %4 = vector.shape_cast %3 : vector<16xf32> to vector<16x1xf32>
    %cst_5 = arith.constant 3.200000e+01 : f32
    %5 = vector.broadcast %cst_5 : f32 to vector<16x1xf32>
    %6 = arith.divf %4, %5 : vector<16x1xf32>
    %7 = vector.broadcast %6 : vector<16x1xf32> to vector<16x32xf32>
    %8 = arith.subf %0, %7 : vector<16x32xf32>
    %9 = arith.mulf %8, %8 : vector<16x32xf32>
    %cst_6 = arith.constant dense<0.000000e+00> : vector<16xf32>
    %10 = vector.multi_reduction <add>, %9, %cst_6 [1] : vector<16x32xf32> to vector<16xf32>
    %11 = vector.shape_cast %10 : vector<16xf32> to vector<16x1xf32>
    %cst_7 = arith.constant 3.100000e+01 : f32
    %12 = vector.broadcast %cst_7 : f32 to vector<16x1xf32>
    %13 = arith.divf %11, %12 : vector<16x1xf32>
    %14 = vector.broadcast %6 : vector<16x1xf32> to vector<16x32xf32>
    %15 = arith.subf %0, %14 : vector<16x32xf32>
    %16 = vector.broadcast %1 : vector<1x32xf32> to vector<16x32xf32>
    %17 = arith.mulf %16, %15 : vector<16x32xf32>
    %18 = math.sqrt %13 : vector<16x1xf32>
    %cst_8 = arith.constant 9.99999997E-7 : f32
    %19 = vector.broadcast %cst_8 : f32 to vector<16x1xf32>
    %20 = arith.addf %18, %19 : vector<16x1xf32>
    %21 = vector.broadcast %20 : vector<16x1xf32> to vector<16x32xf32>
    %22 = arith.divf %17, %21 : vector<16x32xf32>
    %23 = vector.broadcast %2 : vector<1x32xf32> to vector<16x32xf32>
    %24 = arith.addf %22, %23 : vector<16x32xf32>
    %25 = arith.truncf %24 : vector<16x32xf32> to vector<16x32xbf16>
    %c0_9 = arith.constant 0 : index
    %c0_10 = arith.constant 0 : index
    %26 = vector.load %arg4[%c0_9, %c0_10] : memref<32x64xbf16, #tpu.memory_space<vmem>>, vector<32x64xbf16>
    %cst_11 = arith.constant dense<0.000000e+00> : vector<16x64xf32>
    %27 = tpu.matmul %25, %26, %cst_11 {dimension_numbers = #tpu.dot_dimension_numbers<[1], [0], [0], [1], [0, 0, 1, 1], [], []>} : vector<16x32xbf16>, vector<32x64xbf16>, vector<16x64xf32> -> vector<16x64xf32>
    %c0_12 = arith.constant 0 : index
    %c0_13 = arith.constant 0 : index
    %28 = vector.load %arg5[%c0_12, %c0_13] : memref<1x64xf32, #tpu.memory_space<vmem>>, vector<1x64xf32>
    %29 = vector.broadcast %28 : vector<1x64xf32> to vector<16x64xf32>
    %30 = arith.addf %27, %29 : vector<16x64xf32>
    %cst_14 = arith.constant 0.000000e+00 : f32
    %31 = vector.broadcast %cst_14 : f32 to vector<16x64xf32>
    %32 = arith.maximumf %30, %31 : vector<16x64xf32>
    %33 = arith.truncf %32 : vector<16x64xf32> to vector<16x64xbf16>
    %c0_15 = arith.constant 0 : index
    %c0_16 = arith.constant 0 : index
    %34 = vector.load %arg6[%c0_15, %c0_16] : memref<64x32xbf16, #tpu.memory_space<vmem>>, vector<64x32xbf16>
    %cst_17 = arith.constant dense<0.000000e+00> : vector<16x32xf32>
    %35 = tpu.matmul %33, %34, %cst_17 {dimension_numbers = #tpu.dot_dimension_numbers<[1], [0], [0], [1], [0, 0, 1, 1], [], []>} : vector<16x64xbf16>, vector<64x32xbf16>, vector<16x32xf32> -> vector<16x32xf32>
    %c0_18 = arith.constant 0 : index
    %c0_19 = arith.constant 0 : index
    %36 = vector.load %arg7[%c0_18, %c0_19] : memref<1x32xf32, #tpu.memory_space<vmem>>, vector<1x32xf32>
    %37 = vector.broadcast %36 : vector<1x32xf32> to vector<16x32xf32>
    %38 = arith.addf %35, %37 : vector<16x32xf32>
    %39 = arith.addf %0, %38 : vector<16x32xf32>
    %c0_20 = arith.constant 0 : index
    %c0_21 = arith.constant 0 : index
    %40 = vector.load %arg8[%c0_20, %c0_21] : memref<16x32xf32, #tpu.memory_space<vmem>>, vector<16x32xf32>
    tpu.vector_store %arg8[%c0_20, %c0_21], %39 {strides = array<i32>} : memref<16x32xf32, #tpu.memory_space<vmem>>, vector<16x32xf32>,
    return
  }
  func.func @transform_0(%arg0: i32) -> (i32, i32) {
    %c0_i32 = arith.constant 0 : i32
    %c0_i32_0 = arith.constant 0 : i32
    return %arg0, %c0_i32 : i32, i32
  }
  func.func @transform_1(%arg0: i32) -> (i32, i32) {
    %c0_i32 = arith.constant 0 : i32
    %c0_i32_0 = arith.constant 0 : i32
    %c0_i32_1 = arith.constant 0 : i32
    return %c0_i32, %c0_i32_0 : i32, i32
  }
  func.func @transform_2(%arg0: i32) -> (i32, i32) {
    %c0_i32 = arith.constant 0 : i32
    %c0_i32_0 = arith.constant 0 : i32
    %c0_i32_1 = arith.constant 0 : i32
    return %c0_i32, %c0_i32_0 : i32, i32
  }
  func.func @transform_3(%arg0: i32) -> (i32, i32) {
    %c0_i32 = arith.constant 0 : i32
    %c0_i32_0 = arith.constant 0 : i32
    %c0_i32_1 = arith.constant 0 : i32
    return %c0_i32, %c0_i32_0 : i32, i32
  }
  func.func @transform_4(%arg0: i32) -> (i32, i32) {
    %c0_i32 = arith.constant 0 : i32
    %c0_i32_0 = arith.constant 0 : i32
    %c0_i32_1 = arith.constant 0 : i32
    return %c0_i32, %c0_i32_0 : i32, i32
  }
  func.func @transform_5(%arg0: i32) -> (i32, i32) {
    %c0_i32 = arith.constant 0 : i32
    %c0_i32_0 = arith.constant 0 : i32
    %c0_i32_1 = arith.constant 0 : i32
    return %c0_i32, %c0_i32_0 : i32, i32
  }
  func.func @transform_6(%arg0: i32) -> (i32, i32) {
    %c0_i32 = arith.constant 0 : i32
    %c0_i32_0 = arith.constant 0 : i32
    %c0_i32_1 = arith.constant 0 : i32
    return %c0_i32, %c0_i32_0 : i32, i32
  }
  func.func @transform_7(%arg0: i32) -> (i32, i32) {
    %c0_i32 = arith.constant 0 : i32
    %c0_i32_0 = arith.constant 0 : i32
    return %arg0, %c0_i32 : i32, i32
  }
}

module attributes {stable_mosaic.version = 11 : i64} {
  func.func @_mha_kernel(%arg0: i32, %arg1: memref<1x8x32xf32, #tpu.memory_space<vmem>>, %arg2: memref<1x32xf32, #tpu.memory_space<vmem>>, %arg3: memref<1x32xf32, #tpu.memory_space<vmem>>, %arg4: memref<32x96xbf16, #tpu.memory_space<vmem>>, %arg5: memref<1x96xf32, #tpu.memory_space<vmem>>, %arg6: memref<32x16xbf16, #tpu.memory_space<vmem>>, %arg7: memref<1x16xf32, #tpu.memory_space<vmem>>, %arg8: memref<32x16xbf16, #tpu.memory_space<vmem>>, %arg9: memref<1x16xf32, #tpu.memory_space<vmem>>, %arg10: memref<32x32xbf16, #tpu.memory_space<vmem>>, %arg11: memref<1x32xf32, #tpu.memory_space<vmem>>, %arg12: memref<1x1x8xf32, #tpu.memory_space<vmem>>, %arg13: memref<1x8x32xf32, #tpu.memory_space<vmem>>) attributes {dimension_semantics = [#tpu.dimension_semantics<parallel>], iteration_bounds = array<i64: 2>, scalar_prefetch = 0 : i64, scratch_operands = 0 : i64, tpu.core_type = #tpu.core_type<tc>, window_params = [{transform_indices = @transform_0, window_bounds = array<i64: 1, 8, 32>}, {pipeline_mode = #tpu.pipeline_mode<synchronous>, transform_indices = @transform_1, window_bounds = array<i64: 1, 32>}, {pipeline_mode = #tpu.pipeline_mode<synchronous>, transform_indices = @transform_2, window_bounds = array<i64: 1, 32>}, {pipeline_mode = #tpu.pipeline_mode<synchronous>, transform_indices = @transform_3, window_bounds = array<i64: 32, 96>}, {pipeline_mode = #tpu.pipeline_mode<synchronous>, transform_indices = @transform_4, window_bounds = array<i64: 1, 96>}, {pipeline_mode = #tpu.pipeline_mode<synchronous>, transform_indices = @transform_5, window_bounds = array<i64: 32, 16>}, {pipeline_mode = #tpu.pipeline_mode<synchronous>, transform_indices = @transform_6, window_bounds = array<i64: 1, 16>}, {pipeline_mode = #tpu.pipeline_mode<synchronous>, transform_indices = @transform_7, window_bounds = array<i64: 32, 16>}, {pipeline_mode = #tpu.pipeline_mode<synchronous>, transform_indices = @transform_8, window_bounds = array<i64: 1, 16>}, {pipeline_mode = #tpu.pipeline_mode<synchronous>, transform_indices = @transform_9, window_bounds = array<i64: 32, 32>}, {pipeline_mode = #tpu.pipeline_mode<synchronous>, transform_indices = @transform_10, window_bounds = array<i64: 1, 32>}, {transform_indices = @transform_11, window_bounds = array<i64: 1, 1, 8>}, {transform_indices = @transform_12, window_bounds = array<i64: 1, 8, 32>}]} {
    %c0 = arith.constant 0 : index
    %c0_0 = arith.constant 0 : index
    %c0_1 = arith.constant 0 : index
    %0 = vector.load %arg1[%c0, %c0_0, %c0_1] : memref<1x8x32xf32, #tpu.memory_space<vmem>>, vector<1x8x32xf32>
    %1 = vector.shape_cast %0 : vector<1x8x32xf32> to vector<8x32xf32>
    %c0_2 = arith.constant 0 : index
    %c0_3 = arith.constant 0 : index
    %2 = vector.load %arg2[%c0_2, %c0_3] : memref<1x32xf32, #tpu.memory_space<vmem>>, vector<1x32xf32>
    %c0_4 = arith.constant 0 : index
    %c0_5 = arith.constant 0 : index
    %3 = vector.load %arg3[%c0_4, %c0_5] : memref<1x32xf32, #tpu.memory_space<vmem>>, vector<1x32xf32>
    %cst = arith.constant dense<0.000000e+00> : vector<8xf32>
    %4 = vector.multi_reduction <add>, %1, %cst [1] : vector<8x32xf32> to vector<8xf32>
    %5 = vector.shape_cast %4 : vector<8xf32> to vector<8x1xf32>
    %cst_6 = arith.constant 3.200000e+01 : f32
    %6 = vector.broadcast %cst_6 : f32 to vector<8x1xf32>
    %7 = arith.divf %5, %6 : vector<8x1xf32>
    %8 = vector.broadcast %7 : vector<8x1xf32> to vector<8x32xf32>
    %9 = arith.subf %1, %8 : vector<8x32xf32>
    %10 = arith.mulf %9, %9 : vector<8x32xf32>
    %cst_7 = arith.constant dense<0.000000e+00> : vector<8xf32>
    %11 = vector.multi_reduction <add>, %10, %cst_7 [1] : vector<8x32xf32> to vector<8xf32>
    %12 = vector.shape_cast %11 : vector<8xf32> to vector<8x1xf32>
    %cst_8 = arith.constant 3.100000e+01 : f32
    %13 = vector.broadcast %cst_8 : f32 to vector<8x1xf32>
    %14 = arith.divf %12, %13 : vector<8x1xf32>
    %15 = vector.broadcast %7 : vector<8x1xf32> to vector<8x32xf32>
    %16 = arith.subf %1, %15 : vector<8x32xf32>
    %17 = vector.broadcast %2 : vector<1x32xf32> to vector<8x32xf32>
    %18 = arith.mulf %17, %16 : vector<8x32xf32>
    %19 = math.sqrt %14 : vector<8x1xf32>
    %cst_9 = arith.constant 9.99999997E-7 : f32
    %20 = vector.broadcast %cst_9 : f32 to vector<8x1xf32>
    %21 = arith.addf %19, %20 : vector<8x1xf32>
    %22 = vector.broadcast %21 : vector<8x1xf32> to vector<8x32xf32>
    %23 = arith.divf %18, %22 : vector<8x32xf32>
    %24 = vector.broadcast %3 : vector<1x32xf32> to vector<8x32xf32>
    %25 = arith.addf %23, %24 : vector<8x32xf32>
    %26 = arith.truncf %25 : vector<8x32xf32> to vector<8x32xbf16>
    %c0_10 = arith.constant 0 : index
    %c0_11 = arith.constant 0 : index
    %27 = vector.load %arg4[%c0_10, %c0_11] : memref<32x96xbf16, #tpu.memory_space<vmem>>, vector<32x96xbf16>
    %cst_12 = arith.constant dense<0.000000e+00> : vector<8x96xf32>
    %28 = tpu.matmul %26, %27, %cst_12 {dimension_numbers = #tpu.dot_dimension_numbers<[1], [0], [0], [1], [0, 0, 1, 1], [], []>} : vector<8x32xbf16>, vector<32x96xbf16>, vector<8x96xf32> -> vector<8x96xf32>
    %c0_13 = arith.constant 0 : index
    %c0_14 = arith.constant 0 : index
    %29 = vector.load %arg5[%c0_13, %c0_14] : memref<1x96xf32, #tpu.memory_space<vmem>>, vector<1x96xf32>
    %30 = vector.broadcast %29 : vector<1x96xf32> to vector<8x96xf32>
    %31 = arith.addf %28, %30 : vector<8x96xf32>
    %32 = vector.extract_strided_slice %31 {offsets = [0, 0], sizes = [8, 32], strides = [1, 1]} : vector<8x96xf32> to vector<8x32xf32>
    %33 = vector.extract_strided_slice %31 {offsets = [0, 32], sizes = [8, 32], strides = [1, 1]} : vector<8x96xf32> to vector<8x32xf32>
    %34 = vector.extract_strided_slice %31 {offsets = [0, 64], sizes = [8, 32], strides = [1, 1]} : vector<8x96xf32> to vector<8x32xf32>
    %35 = arith.truncf %32 : vector<8x32xf32> to vector<8x32xbf16>
    %36 = arith.truncf %33 : vector<8x32xf32> to vector<8x32xbf16>
    %37 = arith.truncf %34 : vector<8x32xf32> to vector<8x32xbf16>
    %c0_15 = arith.constant 0 : index
    %c0_16 = arith.constant 0 : index
    %c0_17 = arith.constant 0 : index
    %38 = vector.load %arg12[%c0_15, %c0_16, %c0_17] : memref<1x1x8xf32, #tpu.memory_space<vmem>>, vector<1x1x8xf32>
    %39 = vector.shape_cast %38 : vector<1x1x8xf32> to vector<1x8xf32>
    %c0_18 = arith.constant 0 : index
    %c0_19 = arith.constant 0 : index
    %40 = vector.load %arg6[%c0_18, %c0_19] : memref<32x16xbf16, #tpu.memory_space<vmem>>, vector<32x16xbf16>
    %cst_20 = arith.constant dense<0.000000e+00> : vector<8x16xf32>
    %41 = tpu.matmul %36, %40, %cst_20 {dimension_numbers = #tpu.dot_dimension_numbers<[1], [0], [0], [1], [0, 0, 1, 1], [], []>} : vector<8x32xbf16>, vector<32x16xbf16>, vector<8x16xf32> -> vector<8x16xf32>
    %c0_21 = arith.constant 0 : index
    %c0_22 = arith.constant 0 : index
    %42 = vector.load %arg7[%c0_21, %c0_22] : memref<1x16xf32, #tpu.memory_space<vmem>>, vector<1x16xf32>
    %43 = vector.broadcast %42 : vector<1x16xf32> to vector<8x16xf32>
    %44 = arith.addf %41, %43 : vector<8x16xf32>
    %c0_23 = arith.constant 0 : index
    %c0_24 = arith.constant 0 : index
    %45 = vector.load %arg8[%c0_23, %c0_24] : memref<32x16xbf16, #tpu.memory_space<vmem>>, vector<32x16xbf16>
    %cst_25 = arith.constant dense<0.000000e+00> : vector<8x16xf32>
    %46 = tpu.matmul %37, %45, %cst_25 {dimension_numbers = #tpu.dot_dimension_numbers<[1], [0], [0], [1], [0, 0, 1, 1], [], []>} : vector<8x32xbf16>, vector<32x16xbf16>, vector<8x16xf32> -> vector<8x16xf32>
    %c0_26 = arith.constant 0 : index
    %c0_27 = arith.constant 0 : index
    %47 = vector.load %arg9[%c0_26, %c0_27] : memref<1x16xf32, #tpu.memory_space<vmem>>, vector<1x16xf32>
    %48 = vector.broadcast %47 : vector<1x16xf32> to vector<8x16xf32>
    %49 = arith.addf %46, %48 : vector<8x16xf32>
    %50 = arith.truncf %44 : vector<8x16xf32> to vector<8x16xbf16>
    %51 = arith.truncf %49 : vector<8x16xf32> to vector<8x16xbf16>
    %52 = vector.extract_strided_slice %39 {offsets = [0, 0], sizes = [1, 4], strides = [1, 1]} : vector<1x8xf32> to vector<1x4xf32>
    %53 = vector.extract_strided_slice %35 {offsets = [0, 0], sizes = [8, 8], strides = [1, 1]} : vector<8x32xbf16> to vector<8x8xbf16>
    %54 = vector.extract_strided_slice %36 {offsets = [0, 0], sizes = [8, 8], strides = [1, 1]} : vector<8x32xbf16> to vector<8x8xbf16>
    %55 = vector.extract_strided_slice %37 {offsets = [0, 0], sizes = [8, 8], strides = [1, 1]} : vector<8x32xbf16> to vector<8x8xbf16>
    %56 = vector.extract_strided_slice %50 {offsets = [0, 0], sizes = [8, 4], strides = [1, 1]} : vector<8x16xbf16> to vector<8x4xbf16>
    %57 = vector.extract_strided_slice %51 {offsets = [0, 0], sizes = [8, 4], strides = [1, 1]} : vector<8x16xbf16> to vector<8x4xbf16>
    %cst_28 = arith.constant dense<0.000000e+00> : vector<4x8xf32>
    %58 = tpu.matmul %56, %54, %cst_28 {dimension_numbers = #tpu.dot_dimension_numbers<[0], [0], [1], [1], [0, 1, 1, 1], [], []>} : vector<8x4xbf16>, vector<8x8xbf16>, vector<4x8xf32> -> vector<4x8xf32>
    %59 = arith.truncf %58 : vector<4x8xf32> to vector<4x8xbf16>
    %cst_29 = arith.constant dense<0.000000e+00> : vector<8x4xf32>
    %60 = tpu.matmul %53, %59, %cst_29 {dimension_numbers = #tpu.dot_dimension_numbers<[1], [1], [0], [0], [0, 0, 1, 0], [], []>} : vector<8x8xbf16>, vector<4x8xbf16>, vector<8x4xf32> -> vector<8x4xf32>
    %cst_30 = arith.constant 0.353553385 : f32
    %61 = vector.broadcast %cst_30 : f32 to vector<8x4xf32>
    %62 = arith.mulf %60, %61 : vector<8x4xf32>
    %63 = vector.broadcast %52 : vector<1x4xf32> to vector<8x4xf32>
    %64 = arith.addf %62, %63 : vector<8x4xf32>
    %cst_31 = arith.constant dense<0.000000e+00> : vector<4x8xf32>
    %65 = tpu.matmul %57, %55, %cst_31 {dimension_numbers = #tpu.dot_dimension_numbers<[0], [0], [1], [1], [0, 1, 1, 1], [], []>} : vector<8x4xbf16>, vector<8x8xbf16>, vector<4x8xf32> -> vector<4x8xf32>
    %66 = arith.truncf %65 : vector<4x8xf32> to vector<4x8xbf16>
    %cst_32 = arith.constant dense<0xFF800000> : vector<8xf32>
    %67 = vector.multi_reduction <maximumf>, %64, %cst_32 [1] : vector<8x4xf32> to vector<8xf32>
    %68 = vector.shape_cast %67 : vector<8xf32> to vector<8x1xf32>
    %69 = vector.broadcast %68 : vector<8x1xf32> to vector<8x4xf32>
    %70 = arith.subf %64, %69 : vector<8x4xf32>
    %71 = math.exp %70 : vector<8x4xf32>
    %cst_33 = arith.constant dense<0.000000e+00> : vector<8xf32>
    %72 = vector.multi_reduction <add>, %71, %cst_33 [1] : vector<8x4xf32> to vector<8xf32>
    %73 = vector.shape_cast %72 : vector<8xf32> to vector<8x1xf32>
    %74 = vector.broadcast %73 : vector<8x1xf32> to vector<8x4xf32>
    %75 = arith.divf %71, %74 : vector<8x4xf32>
    %76 = arith.truncf %75 : vector<8x4xf32> to vector<8x4xbf16>
    %cst_34 = arith.constant dense<0.000000e+00> : vector<8x8xf32>
    %77 = tpu.matmul %76, %66, %cst_34 {dimension_numbers = #tpu.dot_dimension_numbers<[1], [0], [0], [1], [0, 0, 1, 1], [], []>} : vector<8x4xbf16>, vector<4x8xbf16>, vector<8x8xf32> -> vector<8x8xf32>
    %78 = vector.extract_strided_slice %35 {offsets = [0, 8], sizes = [8, 8], strides = [1, 1]} : vector<8x32xbf16> to vector<8x8xbf16>
    %79 = vector.extract_strided_slice %36 {offsets = [0, 8], sizes = [8, 8], strides = [1, 1]} : vector<8x32xbf16> to vector<8x8xbf16>
    %80 = vector.extract_strided_slice %37 {offsets = [0, 8], sizes = [8, 8], strides = [1, 1]} : vector<8x32xbf16> to vector<8x8xbf16>
    %81 = vector.extract_strided_slice %50 {offsets = [0, 4], sizes = [8, 4], strides = [1, 1]} : vector<8x16xbf16> to vector<8x4xbf16>
    %82 = vector.extract_strided_slice %51 {offsets = [0, 4], sizes = [8, 4], strides = [1, 1]} : vector<8x16xbf16> to vector<8x4xbf16>
    %cst_35 = arith.constant dense<0.000000e+00> : vector<4x8xf32>
    %83 = tpu.matmul %81, %79, %cst_35 {dimension_numbers = #tpu.dot_dimension_numbers<[0], [0], [1], [1], [0, 1, 1, 1], [], []>} : vector<8x4xbf16>, vector<8x8xbf16>, vector<4x8xf32> -> vector<4x8xf32>
    %84 = arith.truncf %83 : vector<4x8xf32> to vector<4x8xbf16>
    %cst_36 = arith.constant dense<0.000000e+00> : vector<8x4xf32>
    %85 = tpu.matmul %78, %84, %cst_36 {dimension_numbers = #tpu.dot_dimension_numbers<[1], [1], [0], [0], [0, 0, 1, 0], [], []>} : vector<8x8xbf16>, vector<4x8xbf16>, vector<8x4xf32> -> vector<8x4xf32>
    %cst_37 = arith.constant 0.353553385 : f32
    %86 = vector.broadcast %cst_37 : f32 to vector<8x4xf32>
    %87 = arith.mulf %85, %86 : vector<8x4xf32>
    %88 = vector.broadcast %52 : vector<1x4xf32> to vector<8x4xf32>
    %89 = arith.addf %87, %88 : vector<8x4xf32>
    %cst_38 = arith.constant dense<0.000000e+00> : vector<4x8xf32>
    %90 = tpu.matmul %82, %80, %cst_38 {dimension_numbers = #tpu.dot_dimension_numbers<[0], [0], [1], [1], [0, 1, 1, 1], [], []>} : vector<8x4xbf16>, vector<8x8xbf16>, vector<4x8xf32> -> vector<4x8xf32>
    %91 = arith.truncf %90 : vector<4x8xf32> to vector<4x8xbf16>
    %cst_39 = arith.constant dense<0xFF800000> : vector<8xf32>
    %92 = vector.multi_reduction <maximumf>, %89, %cst_39 [1] : vector<8x4xf32> to vector<8xf32>
    %93 = vector.shape_cast %92 : vector<8xf32> to vector<8x1xf32>
    %94 = vector.broadcast %93 : vector<8x1xf32> to vector<8x4xf32>
    %95 = arith.subf %89, %94 : vector<8x4xf32>
    %96 = math.exp %95 : vector<8x4xf32>
    %cst_40 = arith.constant dense<0.000000e+00> : vector<8xf32>
    %97 = vector.multi_reduction <add>, %96, %cst_40 [1] : vector<8x4xf32> to vector<8xf32>
    %98 = vector.shape_cast %97 : vector<8xf32> to vector<8x1xf32>
    %99 = vector.broadcast %98 : vector<8x1xf32> to vector<8x4xf32>
    %100 = arith.divf %96, %99 : vector<8x4xf32>
    %101 = arith.truncf %100 : vector<8x4xf32> to vector<8x4xbf16>
    %cst_41 = arith.constant dense<0.000000e+00> : vector<8x8xf32>
    %102 = tpu.matmul %101, %91, %cst_41 {dimension_numbers = #tpu.dot_dimension_numbers<[1], [0], [0], [1], [0, 0, 1, 1], [], []>} : vector<8x4xbf16>, vector<4x8xbf16>, vector<8x8xf32> -> vector<8x8xf32>
    %103 = vector.extract_strided_slice %35 {offsets = [0, 16], sizes = [8, 8], strides = [1, 1]} : vector<8x32xbf16> to vector<8x8xbf16>
    %104 = vector.extract_strided_slice %36 {offsets = [0, 16], sizes = [8, 8], strides = [1, 1]} : vector<8x32xbf16> to vector<8x8xbf16>
    %105 = vector.extract_strided_slice %37 {offsets = [0, 16], sizes = [8, 8], strides = [1, 1]} : vector<8x32xbf16> to vector<8x8xbf16>
    %106 = vector.extract_strided_slice %50 {offsets = [0, 8], sizes = [8, 4], strides = [1, 1]} : vector<8x16xbf16> to vector<8x4xbf16>
    %107 = vector.extract_strided_slice %51 {offsets = [0, 8], sizes = [8, 4], strides = [1, 1]} : vector<8x16xbf16> to vector<8x4xbf16>
    %cst_42 = arith.constant dense<0.000000e+00> : vector<4x8xf32>
    %108 = tpu.matmul %106, %104, %cst_42 {dimension_numbers = #tpu.dot_dimension_numbers<[0], [0], [1], [1], [0, 1, 1, 1], [], []>} : vector<8x4xbf16>, vector<8x8xbf16>, vector<4x8xf32> -> vector<4x8xf32>
    %109 = arith.truncf %108 : vector<4x8xf32> to vector<4x8xbf16>
    %cst_43 = arith.constant dense<0.000000e+00> : vector<8x4xf32>
    %110 = tpu.matmul %103, %109, %cst_43 {dimension_numbers = #tpu.dot_dimension_numbers<[1], [1], [0], [0], [0, 0, 1, 0], [], []>} : vector<8x8xbf16>, vector<4x8xbf16>, vector<8x4xf32> -> vector<8x4xf32>
    %cst_44 = arith.constant 0.353553385 : f32
    %111 = vector.broadcast %cst_44 : f32 to vector<8x4xf32>
    %112 = arith.mulf %110, %111 : vector<8x4xf32>
    %113 = vector.broadcast %52 : vector<1x4xf32> to vector<8x4xf32>
    %114 = arith.addf %112, %113 : vector<8x4xf32>
    %cst_45 = arith.constant dense<0.000000e+00> : vector<4x8xf32>
    %115 = tpu.matmul %107, %105, %cst_45 {dimension_numbers = #tpu.dot_dimension_numbers<[0], [0], [1], [1], [0, 1, 1, 1], [], []>} : vector<8x4xbf16>, vector<8x8xbf16>, vector<4x8xf32> -> vector<4x8xf32>
    %116 = arith.truncf %115 : vector<4x8xf32> to vector<4x8xbf16>
    %cst_46 = arith.constant dense<0xFF800000> : vector<8xf32>
    %117 = vector.multi_reduction <maximumf>, %114, %cst_46 [1] : vector<8x4xf32> to vector<8xf32>
    %118 = vector.shape_cast %117 : vector<8xf32> to vector<8x1xf32>
    %119 = vector.broadcast %118 : vector<8x1xf32> to vector<8x4xf32>
    %120 = arith.subf %114, %119 : vector<8x4xf32>
    %121 = math.exp %120 : vector<8x4xf32>
    %cst_47 = arith.constant dense<0.000000e+00> : vector<8xf32>
    %122 = vector.multi_reduction <add>, %121, %cst_47 [1] : vector<8x4xf32> to vector<8xf32>
    %123 = vector.shape_cast %122 : vector<8xf32> to vector<8x1xf32>
    %124 = vector.broadcast %123 : vector<8x1xf32> to vector<8x4xf32>
    %125 = arith.divf %121, %124 : vector<8x4xf32>
    %126 = arith.truncf %125 : vector<8x4xf32> to vector<8x4xbf16>
    %cst_48 = arith.constant dense<0.000000e+00> : vector<8x8xf32>
    %127 = tpu.matmul %126, %116, %cst_48 {dimension_numbers = #tpu.dot_dimension_numbers<[1], [0], [0], [1], [0, 0, 1, 1], [], []>} : vector<8x4xbf16>, vector<4x8xbf16>, vector<8x8xf32> -> vector<8x8xf32>
    %128 = vector.extract_strided_slice %35 {offsets = [0, 24], sizes = [8, 8], strides = [1, 1]} : vector<8x32xbf16> to vector<8x8xbf16>
    %129 = vector.extract_strided_slice %36 {offsets = [0, 24], sizes = [8, 8], strides = [1, 1]} : vector<8x32xbf16> to vector<8x8xbf16>
    %130 = vector.extract_strided_slice %37 {offsets = [0, 24], sizes = [8, 8], strides = [1, 1]} : vector<8x32xbf16> to vector<8x8xbf16>
    %131 = vector.extract_strided_slice %50 {offsets = [0, 12], sizes = [8, 4], strides = [1, 1]} : vector<8x16xbf16> to vector<8x4xbf16>
    %132 = vector.extract_strided_slice %51 {offsets = [0, 12], sizes = [8, 4], strides = [1, 1]} : vector<8x16xbf16> to vector<8x4xbf16>
    %cst_49 = arith.constant dense<0.000000e+00> : vector<4x8xf32>
    %133 = tpu.matmul %131, %129, %cst_49 {dimension_numbers = #tpu.dot_dimension_numbers<[0], [0], [1], [1], [0, 1, 1, 1], [], []>} : vector<8x4xbf16>, vector<8x8xbf16>, vector<4x8xf32> -> vector<4x8xf32>
    %134 = arith.truncf %133 : vector<4x8xf32> to vector<4x8xbf16>
    %cst_50 = arith.constant dense<0.000000e+00> : vector<8x4xf32>
    %135 = tpu.matmul %128, %134, %cst_50 {dimension_numbers = #tpu.dot_dimension_numbers<[1], [1], [0], [0], [0, 0, 1, 0], [], []>} : vector<8x8xbf16>, vector<4x8xbf16>, vector<8x4xf32> -> vector<8x4xf32>
    %cst_51 = arith.constant 0.353553385 : f32
    %136 = vector.broadcast %cst_51 : f32 to vector<8x4xf32>
    %137 = arith.mulf %135, %136 : vector<8x4xf32>
    %138 = vector.broadcast %52 : vector<1x4xf32> to vector<8x4xf32>
    %139 = arith.addf %137, %138 : vector<8x4xf32>
    %cst_52 = arith.constant dense<0.000000e+00> : vector<4x8xf32>
    %140 = tpu.matmul %132, %130, %cst_52 {dimension_numbers = #tpu.dot_dimension_numbers<[0], [0], [1], [1], [0, 1, 1, 1], [], []>} : vector<8x4xbf16>, vector<8x8xbf16>, vector<4x8xf32> -> vector<4x8xf32>
    %141 = arith.truncf %140 : vector<4x8xf32> to vector<4x8xbf16>
    %cst_53 = arith.constant dense<0xFF800000> : vector<8xf32>
    %142 = vector.multi_reduction <maximumf>, %139, %cst_53 [1] : vector<8x4xf32> to vector<8xf32>
    %143 = vector.shape_cast %142 : vector<8xf32> to vector<8x1xf32>
    %144 = vector.broadcast %143 : vector<8x1xf32> to vector<8x4xf32>
    %145 = arith.subf %139, %144 : vector<8x4xf32>
    %146 = math.exp %145 : vector<8x4xf32>
    %cst_54 = arith.constant dense<0.000000e+00> : vector<8xf32>
    %147 = vector.multi_reduction <add>, %146, %cst_54 [1] : vector<8x4xf32> to vector<8xf32>
    %148 = vector.shape_cast %147 : vector<8xf32> to vector<8x1xf32>
    %149 = vector.broadcast %148 : vector<8x1xf32> to vector<8x4xf32>
    %150 = arith.divf %146, %149 : vector<8x4xf32>
    %151 = arith.truncf %150 : vector<8x4xf32> to vector<8x4xbf16>
    %cst_55 = arith.constant dense<0.000000e+00> : vector<8x8xf32>
    %152 = tpu.matmul %151, %141, %cst_55 {dimension_numbers = #tpu.dot_dimension_numbers<[1], [0], [0], [1], [0, 0, 1, 1], [], []>} : vector<8x4xbf16>, vector<4x8xbf16>, vector<8x8xf32> -> vector<8x8xf32>
    %153 = tpu.concatenate %77, %102, %127, %152 in 1 : vector<8x8xf32>, vector<8x8xf32>, vector<8x8xf32>, vector<8x8xf32> -> vector<8x32xf32>
    %154 = arith.truncf %153 : vector<8x32xf32> to vector<8x32xbf16>
    %c0_56 = arith.constant 0 : index
    %c0_57 = arith.constant 0 : index
    %155 = vector.load %arg10[%c0_56, %c0_57] : memref<32x32xbf16, #tpu.memory_space<vmem>>, vector<32x32xbf16>
    %cst_58 = arith.constant dense<0.000000e+00> : vector<8x32xf32>
    %156 = tpu.matmul %154, %155, %cst_58 {dimension_numbers = #tpu.dot_dimension_numbers<[1], [0], [0], [1], [0, 0, 1, 1], [], []>} : vector<8x32xbf16>, vector<32x32xbf16>, vector<8x32xf32> -> vector<8x32xf32>
    %c0_59 = arith.constant 0 : index
    %c0_60 = arith.constant 0 : index
    %157 = vector.load %arg11[%c0_59, %c0_60] : memref<1x32xf32, #tpu.memory_space<vmem>>, vector<1x32xf32>
    %158 = vector.broadcast %157 : vector<1x32xf32> to vector<8x32xf32>
    %159 = arith.addf %156, %158 : vector<8x32xf32>
    %160 = arith.addf %1, %159 : vector<8x32xf32>
    %c0_61 = arith.constant 0 : index
    %c0_62 = arith.constant 0 : index
    %c0_63 = arith.constant 0 : index
    %161 = vector.load %arg13[%c0_61, %c0_62, %c0_63] : memref<1x8x32xf32, #tpu.memory_space<vmem>>, vector<1x8x32xf32>
    %162 = vector.shape_cast %161 : vector<1x8x32xf32> to vector<8x32xf32>
    %163 = vector.shape_cast %160 : vector<8x32xf32> to vector<1x8x32xf32>
    tpu.vector_store %arg13[%c0_61, %c0_62, %c0_63], %163 {strides = array<i32>} : memref<1x8x32xf32, #tpu.memory_space<vmem>>, vector<1x8x32xf32>,
    return
  }
  func.func @transform_0(%arg0: i32) -> (i32, i32, i32) {
    %c0_i32 = arith.constant 0 : i32
    %c0_i32_0 = arith.constant 0 : i32
    %c0_i32_1 = arith.constant 0 : i32
    return %arg0, %c0_i32, %c0_i32_0 : i32, i32, i32
  }
  func.func @transform_1(%arg0: i32) -> (i32, i32) {
    %c0_i32 = arith.constant 0 : i32
    %c0_i32_0 = arith.constant 0 : i32
    %c0_i32_1 = arith.constant 0 : i32
    return %c0_i32, %c0_i32_0 : i32, i32
  }
  func.func @transform_2(%arg0: i32) -> (i32, i32) {
    %c0_i32 = arith.constant 0 : i32
    %c0_i32_0 = arith.constant 0 : i32
    %c0_i32_1 = arith.constant 0 : i32
    return %c0_i32, %c0_i32_0 : i32, i32
  }
  func.func @transform_3(%arg0: i32) -> (i32, i32) {
    %c0_i32 = arith.constant 0 : i32
    %c0_i32_0 = arith.constant 0 : i32
    %c0_i32_1 = arith.constant 0 : i32
    return %c0_i32, %c0_i32_0 : i32, i32
  }
  func.func @transform_4(%arg0: i32) -> (i32, i32) {
    %c0_i32 = arith.constant 0 : i32
    %c0_i32_0 = arith.constant 0 : i32
    %c0_i32_1 = arith.constant 0 : i32
    return %c0_i32, %c0_i32_0 : i32, i32
  }
  func.func @transform_5(%arg0: i32) -> (i32, i32) {
    %c0_i32 = arith.constant 0 : i32
    %c0_i32_0 = arith.constant 0 : i32
    %c0_i32_1 = arith.constant 0 : i32
    return %c0_i32, %c0_i32_0 : i32, i32
  }
  func.func @transform_6(%arg0: i32) -> (i32, i32) {
    %c0_i32 = arith.constant 0 : i32
    %c0_i32_0 = arith.constant 0 : i32
    %c0_i32_1 = arith.constant 0 : i32
    return %c0_i32, %c0_i32_0 : i32, i32
  }
  func.func @transform_7(%arg0: i32) -> (i32, i32) {
    %c0_i32 = arith.constant 0 : i32
    %c0_i32_0 = arith.constant 0 : i32
    %c0_i32_1 = arith.constant 0 : i32
    return %c0_i32, %c0_i32_0 : i32, i32
  }
  func.func @transform_8(%arg0: i32) -> (i32, i32) {
    %c0_i32 = arith.constant 0 : i32
    %c0_i32_0 = arith.constant 0 : i32
    %c0_i32_1 = arith.constant 0 : i32
    return %c0_i32, %c0_i32_0 : i32, i32
  }
  func.func @transform_9(%arg0: i32) -> (i32, i32) {
    %c0_i32 = arith.constant 0 : i32
    %c0_i32_0 = arith.constant 0 : i32
    %c0_i32_1 = arith.constant 0 : i32
    return %c0_i32, %c0_i32_0 : i32, i32
  }
  func.func @transform_10(%arg0: i32) -> (i32, i32) {
    %c0_i32 = arith.constant 0 : i32
    %c0_i32_0 = arith.constant 0 : i32
    %c0_i32_1 = arith.constant 0 : i32
    return %c0_i32, %c0_i32_0 : i32, i32
  }
  func.func @transform_11(%arg0: i32) -> (i32, i32, i32) {
    %c0_i32 = arith.constant 0 : i32
    %c0_i32_0 = arith.constant 0 : i32
    %c0_i32_1 = arith.constant 0 : i32
    return %arg0, %c0_i32, %c0_i32_0 : i32, i32, i32
  }
  func.func @transform_12(%arg0: i32) -> (i32, i32, i32) {
    %c0_i32 = arith.constant 0 : i32
    %c0_i32_0 = arith.constant 0 : i32
    %c0_i32_1 = arith.constant 0 : i32
    return %arg0, %c0_i32, %c0_i32_0 : i32, i32, i32
  }
}

</mosaic_0001>

<llo_original>
// kernel: linformer_encoder_forward.9
$region0: #{linformer_encoder_forward.9}
  #allocation0 [shape = 'u32[]', space=smem, size = 0x4, offset = 0x4, fixed_abs, tag = 'smem constant byte address 0x4 - core index']
  #allocation1 [shape = 'u32[72,128]{1,0:T(1,128)}', space=vmem, size = 0x9000, scoped, tag = 'internal scratch']
  %s0 = inlined_call_operand.vmem [shape: f32[16,32], index: 0, kind: input, shape index: {}]
  %s1 = inlined_call_operand.vmem [shape: f32[1,32], index: 1, kind: input, shape index: {}]
  %s2 = inlined_call_operand.vmem [shape: f32[1,32], index: 2, kind: input, shape index: {}]
  %s3 = inlined_call_operand.hbm [shape: f32[16,32], index: 3, kind: output, shape index: {}]
  %s4 = sld [smem:[#allocation0]]
  $region22: #{linformer_encoder_forward.9} parent=0
    _
  %s6 = ssub.s32 1, %s4
  %s7 = scalar_select 0, %s6, %s4
  $region1: #{linformer_encoder_forward.9} parent=0
    #allocation2 [shape = 'u8[8192]{0}', space=vmem, size = 0x2000, scoped, tag = 'output window, operand 0, single buffered']
    #allocation3 [shape = 's32[1]{0}', space=sflag, size = 0x4, scoped, tag = 'scoped memory for linformer_encoder_forward.9']
    %8 = vsyncpa [#allocation3], 0
    // Predicated region
    $region2: #{linformer_encoder_forward.9} parent=1 // pred_check
      _
    $region3: #{linformer_encoder_forward.9} parent=1 // pred_check_branch
      %10 = sbr.rel (0) target = $region5
    $region4: #{linformer_encoder_forward.9} parent=1 // pred_region
      _
    $region5: #{linformer_encoder_forward.9} parent=1 // pred_fallthru
      _
    // Predicated region
    $region6: #{linformer_encoder_forward.9} parent=1 // pred_check
      _
    $region7: #{linformer_encoder_forward.9} parent=1 // pred_check_branch
      %12 = sbr.rel (0) target = $region9
    $region8: #{linformer_encoder_forward.9} parent=1 // pred_region
      _
    $region9: #{linformer_encoder_forward.9} parent=1 // pred_fallthru
      _
    // Predicated region
    $region10: #{linformer_encoder_forward.9} parent=1 // pred_check
      _
    $region11: #{linformer_encoder_forward.9} parent=1 // pred_check_branch
      %14 = sbr.rel (0) target = $region13
    $region12: #{linformer_encoder_forward.9} parent=1 // pred_region
      _
    $region13: #{linformer_encoder_forward.9} parent=1 // pred_fallthru
      _
    %v15 = vld [vmem:[%s0] sm:$0xff]
    %v16 = vld [vmem:[%s0 + $0x8] sm:$0xff]
    %v17 = vld [vmem:[%s1] sm:$0x1]
    %v18 = vld [vmem:[%s2] sm:$0x1]
    %vm19 = vcmask 261120
    %v20 = vsel %vm19, %v15, 0.0
    %21 = vadd.xlane.f32.xlu0 %v20
    %v22 = vpop.xlane.xlu0 %21
    %v23 = vsel %vm19, %v16, 0.0
    %24 = vadd.xlane.f32.xlu0 %v23
    %v25 = vpop.xlane.xlu0 %24
    %v26 = vrcp.pop 32.0
    %v27 = vmul.f32 32.0, %v26
    %v28 = vsub.f32 1.0, %v27
    %v29 = vmul.f32 %v26, %v28
    %v30 = vadd.f32 %v26, %v29
    %vm31 = vweird.f32 %v26
    %v32 = vsel %vm31, %v26, %v30
    %v33 = vmul.f32 %v22, %v32
    %v34 = vmul.f32 %v25, %v32
    %v35 = vsub.f32 %v15, %v33
    %v36 = vsub.f32 %v16, %v34
    %v37 = vmul.f32 %v35, %v35
    %v38 = vmul.f32 %v36, %v36
    %v39 = vsel %vm19, %v37, 0.0
    %40 = vadd.xlane.f32.xlu0 %v39
    %v41 = vpop.xlane.xlu0 %40
    %v42 = vsel %vm19, %v38, 0.0
    %43 = vadd.xlane.f32.xlu0 %v42
    %v44 = vpop.xlane.xlu0 %43
    %v45 = vrcp.pop 31.0
    %v46 = vmul.f32 31.0, %v45
    %v47 = vsub.f32 1.0, %v46
    %v48 = vmul.f32 %v45, %v47
    %v49 = vadd.f32 %v45, %v48
    %vm50 = vweird.f32 %v45
    %v51 = vsel %vm50, %v45, %v49
    %v52 = vmul.f32 %v41, %v51
    %v53 = vmul.f32 %v44, %v51
    %v55 = vperm.slane %v17, 0
    %v57 = vmul.f32 %v55, %v35
    %v58 = vmul.f32 %v55, %v36
    %v59 = vrsqrt.pop %v52
    %v60 = vmul.f32 %v59, %v52
    %v61 = vmul.f32 %v60, %v59
    %v62 = vmul.f32 0.5, %v61
    %v63 = vsub.f32 1.5, %v62
    %v64 = vmul.f32 %v59, %v63
    %v65 = vmul.f32 %v52, %v64
    %vm66 = vcmp.eq.f32.partialorder %v52, inf
    %v67 = vsel %vm66, %v52, %v65
    %vm68 = vcmp.eq.f32.partialorder %v52, 0.0
    %v69 = vand.u32 %v52, 2147483648
    %v70 = vsel %vm68, %v69, %v67
    %v71 = vrsqrt.pop %v53
    %v72 = vmul.f32 %v71, %v53
    %v73 = vmul.f32 %v72, %v71
    %v74 = vmul.f32 0.5, %v73
    %v75 = vsub.f32 1.5, %v74
    %v76 = vmul.f32 %v71, %v75
    %v77 = vmul.f32 %v53, %v76
    %vm78 = vcmp.eq.f32.partialorder %v53, inf
    %v79 = vsel %vm78, %v53, %v77
    %vm80 = vcmp.eq.f32.partialorder %v53, 0.0
    %v81 = vand.u32 %v53, 2147483648
    %v82 = vsel %vm80, %v81, %v79
    %v83 = vadd.f32 %v70, 1e-06
    %v84 = vadd.f32 %v82, 1e-06
    %v85 = vrcp.pop %v83
    %v86 = vmul.f32 %v83, %v85
    %v87 = vsub.f32 1.0, %v86
    %v88 = vmul.f32 %v85, %v87
    %v89 = vadd.f32 %v85, %v88
    %vm90 = vweird.f32 %v83
    %vm91 = vweird.f32 %v85
    %vm92 = vmor %vm90, %vm91
    %v93 = vsel %vm92, %v85, %v89
    %v94 = vand.u32 2147483647, %v83
    %vm95 = vcmp.eq.f32.partialorder %v94, 8.507059e+37
    %v96 = vand.u32 %v83, 2147483648
    %v97 = vor.u32 1.1754944e-38, %v96
    %v98 = vsel %vm95, %v97, %v93
    %v99 = vmul.f32 %v57, %v98
    %v100 = vrcp.pop %v84
    %v101 = vmul.f32 %v84, %v100
    %v102 = vsub.f32 1.0, %v101
    %v103 = vmul.f32 %v100, %v102
    %v104 = vadd.f32 %v100, %v103
    %vm105 = vweird.f32 %v84
    %vm106 = vweird.f32 %v100
    %vm107 = vmor %vm105, %vm106
    %v108 = vsel %vm107, %v100, %v104
    %v109 = vand.u32 2147483647, %v84
    %vm110 = vcmp.eq.f32.partialorder %v109, 8.507059e+37
    %v111 = vand.u32 %v84, 2147483648
    %v112 = vor.u32 1.1754944e-38, %v111
    %v113 = vsel %vm110, %v112, %v108
    %v114 = vmul.f32 %v58, %v113
    %v116 = vperm.slane %v18, 0
    %v118 = vadd.f32 %v99, %v116
    %v119 = vadd.f32 %v114, %v116
    %120 = vst.msk [vmem:[#allocation2] sm:$0xff] %vm19, %v118
    %121 = vst.msk [vmem:[#allocation2 + $0x8] sm:$0xff] %vm19, %v119
    // Predicated region
    $region14: #{linformer_encoder_forward.9} parent=1 // pred_check
      _
    $region15: #{linformer_encoder_forward.9} parent=1 // pred_check_branch
      %123 = sbr.rel (0) target = $region17
    $region16: #{linformer_encoder_forward.9} parent=1 // pred_region
      %125 = vsyncadd [#allocation3], 0
      %s126 = sshll.u32 [#allocation2], 4
      %s127 = int_to_ptr.vmem [resolvable:$true] %s126
      %s128 = sshll.u32 %s3, 4
      %s129 = int_to_ptr.hbm [resolvable:$true] %s128
      %134 = dma.vmem_to_hbm [thread:$0]  %s127, 256, %s129, [#allocation3], 128, 128, 8
    $region17: #{linformer_encoder_forward.9} parent=1 // pred_fallthru
      _
    // Predicated region
    $region18: #{linformer_encoder_forward.9} parent=1 // pred_check
      _
    $region19: #{linformer_encoder_forward.9} parent=1 // pred_check_branch
      %136 = sbr.rel (0) target = $region21
    $region20: #{linformer_encoder_forward.9} parent=1 // pred_region
      %138 = dma.done [#allocation3], 256
    $region21: #{linformer_encoder_forward.9} parent=1 // pred_fallthru
      _
    %139 = vsyncpa [#allocation3], 1

// kernel: linformer_encoder_forward.6
$region0: #{linformer_encoder_forward.6}
  #allocation0 [shape = 'u32[]', space=smem, size = 0x4, offset = 0x4, fixed_abs, tag = 'smem constant byte address 0x4 - core index']
  #allocation1 [shape = 'u32[72,128]{1,0:T(1,128)}', space=vmem, size = 0x9000, scoped, tag = 'internal scratch']
  %s0 = inlined_call_operand.vmem [shape: f32[16,32], index: 0, kind: input, shape index: {}]
  %s1 = inlined_call_operand.vmem [shape: f32[1,32], index: 1, kind: input, shape index: {}]
  %s2 = inlined_call_operand.vmem [shape: f32[1,32], index: 2, kind: input, shape index: {}]
  %s3 = inlined_call_operand.vmem [shape: bf16[32,64], index: 3, kind: input, shape index: {}]
  %s4 = inlined_call_operand.vmem [shape: f32[1,64], index: 4, kind: input, shape index: {}]
  %s5 = inlined_call_operand.vmem [shape: bf16[64,32], index: 5, kind: input, shape index: {}]
  %s6 = inlined_call_operand.vmem [shape: f32[1,32], index: 6, kind: input, shape index: {}]
  %s7 = inlined_call_operand.vmem [shape: f32[16,32], index: 7, kind: output, shape index: {}]
  %s8 = sld [smem:[#allocation0]]
  $region38: #{linformer_encoder_forward.6} parent=0
    _
  %s10 = ssub.s32 1, %s8
  %s11 = scalar_select 0, %s10, %s8
  // Predicated region
  $region2: #{linformer_encoder_forward.6} parent=0 // pred_check
    _
  $region3: #{linformer_encoder_forward.6} parent=0 // pred_check_branch
    %13 = sbr.rel (0) target = $region5
  $region4: #{linformer_encoder_forward.6} parent=0 // pred_region
    _
  $region5: #{linformer_encoder_forward.6} parent=0 // pred_fallthru
    _
  // Predicated region
  $region6: #{linformer_encoder_forward.6} parent=0 // pred_check
    _
  $region7: #{linformer_encoder_forward.6} parent=0 // pred_check_branch
    %15 = sbr.rel (0) target = $region9
  $region8: #{linformer_encoder_forward.6} parent=0 // pred_region
    _
  $region9: #{linformer_encoder_forward.6} parent=0 // pred_fallthru
    _
  // Predicated region
  $region10: #{linformer_encoder_forward.6} parent=0 // pred_check
    _
  $region11: #{linformer_encoder_forward.6} parent=0 // pred_check_branch
    %17 = sbr.rel (0) target = $region13
  $region12: #{linformer_encoder_forward.6} parent=0 // pred_region
    _
  $region13: #{linformer_encoder_forward.6} parent=0 // pred_fallthru
    _
  // Predicated region
  $region14: #{linformer_encoder_forward.6} parent=0 // pred_check
    _
  $region15: #{linformer_encoder_forward.6} parent=0 // pred_check_branch
    %19 = sbr.rel (0) target = $region17
  $region16: #{linformer_encoder_forward.6} parent=0 // pred_region
    _
  $region17: #{linformer_encoder_forward.6} parent=0 // pred_fallthru
    _
  // Predicated region
  $region18: #{linformer_encoder_forward.6} parent=0 // pred_check
    _
  $region19: #{linformer_encoder_forward.6} parent=0 // pred_check_branch
    %21 = sbr.rel (0) target = $region21
  $region20: #{linformer_encoder_forward.6} parent=0 // pred_region
    _
  $region21: #{linformer_encoder_forward.6} parent=0 // pred_fallthru
    _
  // Predicated region
  $region22: #{linformer_encoder_forward.6} parent=0 // pred_check
    _
  $region23: #{linformer_encoder_forward.6} parent=0 // pred_check_branch
    %23 = sbr.rel (0) target = $region25
  $region24: #{linformer_encoder_forward.6} parent=0 // pred_region
    _
  $region25: #{linformer_encoder_forward.6} parent=0 // pred_fallthru
    _
  // Predicated region
  $region26: #{linformer_encoder_forward.6} parent=0 // pred_check
    _
  $region27: #{linformer_encoder_forward.6} parent=0 // pred_check_branch
    %25 = sbr.rel (0) target = $region29
  $region28: #{linformer_encoder_forward.6} parent=0 // pred_region
    _
  $region29: #{linformer_encoder_forward.6} parent=0 // pred_fallthru
    _
  %v27 = vld [vmem:[%s0] sm:$0xff]
  %v28 = vld [vmem:[%s0 + $0x8] sm:$0xff]
  %v29 = vld [vmem:[%s1] sm:$0x1]
  %v30 = vld [vmem:[%s2] sm:$0x1]
  %vm31 = vcmask 261120
  %v32 = vsel %vm31, %v27, 0.0
  %33 = vadd.xlane.f32.xlu0 %v32
  %v34 = vpop.xlane.xlu0 %33
  %v35 = vsel %vm31, %v28, 0.0
  %36 = vadd.xlane.f32.xlu0 %v35
  %v37 = vpop.xlane.xlu0 %36
  %v38 = vrcp.pop 32.0
  %v39 = vmul.f32 32.0, %v38
  %v40 = vsub.f32 1.0, %v39
  %v41 = vmul.f32 %v38, %v40
  %v42 = vadd.f32 %v38, %v41
  %vm43 = vweird.f32 %v38
  %v44 = vsel %vm43, %v38, %v42
  %v45 = vmul.f32 %v34, %v44
  %v46 = vmul.f32 %v37, %v44
  %v47 = vsub.f32 %v27, %v45
  %v48 = vsub.f32 %v28, %v46
  %v49 = vmul.f32 %v47, %v47
  %v50 = vmul.f32 %v48, %v48
  %v51 = vsel %vm31, %v49, 0.0
  %52 = vadd.xlane.f32.xlu0 %v51
  %v53 = vpop.xlane.xlu0 %52
  %v54 = vsel %vm31, %v50, 0.0
  %55 = vadd.xlane.f32.xlu0 %v54
  %v56 = vpop.xlane.xlu0 %55
  %v57 = vrcp.pop 31.0
  %v58 = vmul.f32 31.0, %v57
  %v59 = vsub.f32 1.0, %v58
  %v60 = vmul.f32 %v57, %v59
  %v61 = vadd.f32 %v57, %v60
  %vm62 = vweird.f32 %v57
  %v63 = vsel %vm62, %v57, %v61
  %v64 = vmul.f32 %v53, %v63
  %v65 = vmul.f32 %v56, %v63
  %v67 = vperm.slane %v29, 0
  %v69 = vmul.f32 %v67, %v47
  %v70 = vmul.f32 %v67, %v48
  %v71 = vrsqrt.pop %v64
  %v72 = vmul.f32 %v71, %v64
  %v73 = vmul.f32 %v72, %v71
  %v74 = vmul.f32 0.5, %v73
  %v75 = vsub.f32 1.5, %v74
  %v76 = vmul.f32 %v71, %v75
  %v77 = vmul.f32 %v64, %v76
  %vm78 = vcmp.eq.f32.partialorder %v64, inf
  %v79 = vsel %vm78, %v64, %v77
  %vm80 = vcmp.eq.f32.partialorder %v64, 0.0
  %v81 = vand.u32 %v64, 2147483648
  %v82 = vsel %vm80, %v81, %v79
  %v83 = vrsqrt.pop %v65
  %v84 = vmul.f32 %v83, %v65
  %v85 = vmul.f32 %v84, %v83
  %v86 = vmul.f32 0.5, %v85
  %v87 = vsub.f32 1.5, %v86
  %v88 = vmul.f32 %v83, %v87
  %v89 = vmul.f32 %v65, %v88
  %vm90 = vcmp.eq.f32.partialorder %v65, inf
  %v91 = vsel %vm90, %v65, %v89
  %vm92 = vcmp.eq.f32.partialorder %v65, 0.0
  %v93 = vand.u32 %v65, 2147483648
  %v94 = vsel %vm92, %v93, %v91
  %v95 = vadd.f32 %v82, 1e-06
  %v96 = vadd.f32 %v94, 1e-06
  %v97 = vrcp.pop %v95
  %v98 = vmul.f32 %v95, %v97
  %v99 = vsub.f32 1.0, %v98
  %v100 = vmul.f32 %v97, %v99
  %v101 = vadd.f32 %v97, %v100
  %vm102 = vweird.f32 %v95
  %vm103 = vweird.f32 %v97
  %vm104 = vmor %vm102, %vm103
  %v105 = vsel %vm104, %v97, %v101
  %v106 = vand.u32 2147483647, %v95
  %vm107 = vcmp.eq.f32.partialorder %v106, 8.507059e+37
  %v108 = vand.u32 %v95, 2147483648
  %v109 = vor.u32 1.1754944e-38, %v108
  %v110 = vsel %vm107, %v109, %v105
  %v111 = vmul.f32 %v69, %v110
  %v112 = vrcp.pop %v96
  %v113 = vmul.f32 %v96, %v112
  %v114 = vsub.f32 1.0, %v113
  %v115 = vmul.f32 %v112, %v114
  %v116 = vadd.f32 %v112, %v115
  %vm117 = vweird.f32 %v96
  %vm118 = vweird.f32 %v112
  %vm119 = vmor %vm117, %vm118
  %v120 = vsel %vm119, %v112, %v116
  %v121 = vand.u32 2147483647, %v96
  %vm122 = vcmp.eq.f32.partialorder %v121, 8.507059e+37
  %v123 = vand.u32 %v96, 2147483648
  %v124 = vor.u32 1.1754944e-38, %v123
  %v125 = vsel %vm122, %v124, %v120
  %v126 = vmul.f32 %v70, %v125
  %v128 = vperm.slane %v30, 0
  %v130 = vadd.f32 %v111, %v128
  %v131 = vadd.f32 %v126, %v128
  %v132 = vpack.c.bf16 %v131, %v130
  %v133 = vld [vmem:[%s3] sm:$0xf]
  %v134 = vld [vmem:[%s3 + $0x4] sm:$0xf]
  %v135 = vld [vmem:[%s3 + $0x8] sm:$0xf]
  %v136 = vld [vmem:[%s3 + $0xc] sm:$0xf]
  %v137 = vld [vmem:[%s4] sm:$0x1]
  %v139 = vperm.slane %v137, 0
  %v145 = vunpack.c.l.b16 %v133
  %v146 = vunpack.c.l.b16 %v134
  %v147 = vunpack.c.l.b16 %v135
  %v148 = vunpack.c.l.b16 %v136
  %v149 = vpack.c.b16 %v146, %v145
  %v150 = vpack.c.b16 %v148, %v147
  %v154 = vsel %vm31, %v132, 0
  %156 = vmatpush.bf16.msra.mxu0 0
  %157 = vmatpush.bf16.msra.mxu0 0
  %158 = vmatpush.bf16.msra.mxu0 0
  %159 = vmatpush.bf16.msra.mxu0 0
  %160 = vmatpush.bf16.msra.mxu0 0
  %161 = vmatpush.bf16.msra.mxu0 0
  %162 = vmatpush.bf16.msra.mxu0 %v150
  %163 = vmatpush.bf16.msra.mxu0 %v149
  %164 = vmatmul.bf16.gmra.mxu0 %v154
  %v165 = vpop.f32.mrf.mxu0
  %v166 = vadd.f32 %v139, %v165
  %v167 = vpop.f32.mrf.mxu0
  %v168 = vadd.f32 %v139, %v167
  %169 = vdwg.mxu0
  %v170 = vmax.f32 %v166, 0.0
  %v171 = vmax.f32 %v168, 0.0
  %v172 = vpack.c.bf16 %v171, %v170
  %v173 = vld [vmem:[%s5] sm:$0xf]
  %v174 = vld [vmem:[%s5 + $0x4] sm:$0xf]
  %v175 = vld [vmem:[%s5 + $0x8] sm:$0xf]
  %v176 = vld [vmem:[%s5 + $0xc] sm:$0xf]
  %v177 = vld [vmem:[%s5 + $0x10] sm:$0xf]
  %v178 = vld [vmem:[%s5 + $0x14] sm:$0xf]
  %v179 = vld [vmem:[%s5 + $0x18] sm:$0xf]
  %v180 = vld [vmem:[%s5 + $0x1c] sm:$0xf]
  %v181 = vld [vmem:[%s6] sm:$0x1]
  %v183 = vperm.slane %v181, 0
  %v193 = vunpack.c.l.b16 %v173
  %v194 = vunpack.c.l.b16 %v174
  %v195 = vunpack.c.l.b16 %v175
  %v196 = vunpack.c.l.b16 %v176
  %v197 = vunpack.c.l.b16 %v177
  %v198 = vunpack.c.l.b16 %v178
  %v199 = vunpack.c.l.b16 %v179
  %v200 = vunpack.c.l.b16 %v180
  %v201 = vpack.c.b16 %v194, %v193
  %v202 = vpack.c.b16 %v196, %v195
  %v203 = vpack.c.b16 %v198, %v197
  %v204 = vpack.c.b16 %v200, %v199
  %vm209 = vcmask 523264
  %v211 = vsel %vm209, %v172, 0
  %213 = vmatpush.bf16.msra.mxu0 0
  %214 = vmatpush.bf16.msra.mxu0 0
  %215 = vmatpush.bf16.msra.mxu0 0
  %216 = vmatpush.bf16.msra.mxu0 0
  %217 = vmatpush.bf16.msra.mxu0 %v204
  %218 = vmatpush.bf16.msra.mxu0 %v203
  %219 = vmatpush.bf16.msra.mxu0 %v202
  %220 = vmatpush.bf16.msra.mxu0 %v201
  %221 = vmatmul.bf16.gmra.mxu0 %v211
  %v222 = vpop.f32.mrf.mxu0
  %v223 = vadd.f32 %v183, %v222
  %v224 = vpop.f32.mrf.mxu0
  %v225 = vadd.f32 %v183, %v224
  %226 = vdwg.mxu0
  %v227 = vadd.f32 %v27, %v223
  %v228 = vadd.f32 %v28, %v225
  %229 = vst.msk [vmem:[%s7] sm:$0xff] %vm31, %v227
  %230 = vst.msk [vmem:[%s7 + $0x8] sm:$0xff] %vm31, %v228
  // Predicated region
  $region30: #{linformer_encoder_forward.6} parent=0 // pred_check
    _
  $region31: #{linformer_encoder_forward.6} parent=0 // pred_check_branch
    %232 = sbr.rel (0) target = $region33
  $region32: #{linformer_encoder_forward.6} parent=0 // pred_region
    _
  $region33: #{linformer_encoder_forward.6} parent=0 // pred_fallthru
    _
  // Predicated region
  $region34: #{linformer_encoder_forward.6} parent=0 // pred_check
    _
  $region35: #{linformer_encoder_forward.6} parent=0 // pred_check_branch
    %234 = sbr.rel (0) target = $region37
  $region36: #{linformer_encoder_forward.6} parent=0 // pred_region
    _
  $region37: #{linformer_encoder_forward.6} parent=0 // pred_fallthru
    _

// kernel: linformer_encoder_forward.5
$region0: #{linformer_encoder_forward.5}
  #allocation0 [shape = 'u32[]', space=smem, size = 0x4, offset = 0x4, fixed_abs, tag = 'smem constant byte address 0x4 - core index']
  #allocation1 [shape = 'u32[72,128]{1,0:T(1,128)}', space=vmem, size = 0x9000, scoped, tag = 'internal scratch']
  %s0 = inlined_call_operand.vmem [shape: f32[2,8,32], index: 0, kind: input, shape index: {}]
  %s1 = inlined_call_operand.vmem [shape: f32[1,32], index: 1, kind: input, shape index: {}]
  %s2 = inlined_call_operand.vmem [shape: f32[1,32], index: 2, kind: input, shape index: {}]
  %s3 = inlined_call_operand.vmem [shape: bf16[32,96], index: 3, kind: input, shape index: {}]
  %s4 = inlined_call_operand.vmem [shape: f32[1,96], index: 4, kind: input, shape index: {}]
  %s5 = inlined_call_operand.vmem [shape: bf16[32,16], index: 5, kind: input, shape index: {}]
  %s6 = inlined_call_operand.vmem [shape: f32[1,16], index: 6, kind: input, shape index: {}]
  %s7 = inlined_call_operand.vmem [shape: bf16[32,16], index: 7, kind: input, shape index: {}]
  %s8 = inlined_call_operand.vmem [shape: f32[1,16], index: 8, kind: input, shape index: {}]
  %s9 = inlined_call_operand.vmem [shape: bf16[32,32], index: 9, kind: input, shape index: {}]
  %s10 = inlined_call_operand.vmem [shape: f32[1,32], index: 10, kind: input, shape index: {}]
  %s11 = inlined_call_operand.vmem [shape: f32[2,1,8], index: 11, kind: input, shape index: {}]
  %s12 = inlined_call_operand.vmem [shape: f32[2,8,32], index: 12, kind: output, shape index: {}]
  %s13 = sld [smem:[#allocation0]]
  $region81: #{linformer_encoder_forward.5} parent=0
    _
  %s15 = ssub.s32 1, %s13
  %s16 = scalar_select 0, %s15, %s13
  loop: start=0, step=1, limit=4
  $region2: #{linformer_encoder_forward.5} parent=0 // loop_pre_header
    _
  $region3: #{linformer_encoder_forward.5} parent=0 // loop_header
    %s18 = sphi 0, %s22
    %p19 = scmp.ge.s32.totalorder %s18, 4
    %s28 = sphi 0, %s30
    %s31 = sphi 0, %s28
    %s32 = sphi 0, %s31
    %s48 = sphi 0, %s32
    %s52 = sphi 0, %s52
    %s54 = sphi 0, %s52
    %s55 = sphi 0, %s54
    %s69 = sphi 0, %s55
    %s73 = sphi 0, %s73
    %s75 = sphi 0, %s73
    %s76 = sphi 0, %s75
    %s90 = sphi 0, %s76
    %s94 = sphi 0, %s94
    %s96 = sphi 0, %s94
    %s97 = sphi 0, %s96
    %s111 = sphi 0, %s97
    %s115 = sphi 0, %s115
    %s117 = sphi 0, %s115
    %s118 = sphi 0, %s117
    %s132 = sphi 0, %s118
    %s136 = sphi 0, %s136
    %s138 = sphi 0, %s136
    %s139 = sphi 0, %s138
    %s153 = sphi 0, %s139
    %s157 = sphi 0, %s157
    %s159 = sphi 0, %s157
    %s160 = sphi 0, %s159
    %s174 = sphi 0, %s160
    %s178 = sphi 0, %s178
    %s180 = sphi 0, %s178
    %s181 = sphi 0, %s180
    %s195 = sphi 0, %s181
    %s199 = sphi 0, %s199
    %s201 = sphi 0, %s199
    %s202 = sphi 0, %s201
    %s216 = sphi 0, %s202
    %s220 = sphi 0, %s220
    %s222 = sphi 0, %s220
    %s223 = sphi 0, %s222
    %s237 = sphi 0, %s223
    %s241 = sphi 0, %s241
    %s243 = sphi 0, %s241
    %s244 = sphi 0, %s243
    %s258 = sphi 0, %s244
    %s264 = sphi 0, %s266
    %s267 = sphi 0, %s264
    %s268 = sphi 0, %s267
    %s284 = sphi 0, %s268
    %s290 = sphi 0, %s292
    %s293 = sphi 0, %s290
    %s294 = sphi 0, %s293
    %s310 = sphi 0, %s294
  $region4: #{linformer_encoder_forward.5} parent=0 // loop_header_branch
    %21 = sbr.rel (%p19) target = $region8
  $region5: #{linformer_encoder_forward.5} parent=0 // loop_body
    %s23 = ssub.s32 %s18, 1
    %s24 = ssub.s32 %s18, 2
    %s25 = sadd.s32 %s18, 1
    %s26 = ssub.s32 %s18, %s25
    %p27 = scmp.eq.s32.totalorder %s26, 0
    %s29 = sadd.s32 %s28, 1
    %s30 = scalar_select %p27, %s28, %s29
    %p33 = pneg %p27
    %p34 = scmp.eq.s32.totalorder %s18, 1
    %p35 = por %p33, %p34
    %p36 = scmp.ne.s32.totalorder %s28, %s31
    %p37 = scmp.eq.s32.totalorder %s18, 0
    %p38 = por %p36, %p37
    %p39 = scmp.ne.s32.totalorder %s28, %s31
    %p40 = scmp.eq.s32.totalorder %s23, 1
    %p41 = por %p39, %p40
    %p42 = scmp.ne.s32.totalorder %s31, %s32
    %p43 = scmp.eq.s32.totalorder %s23, 0
    %p44 = por %p42, %p43
    %p45 = scmp.ne.s32.totalorder %s31, %s32
    %p46 = scmp.eq.s32.totalorder %s24, 1
    %p47 = por %p45, %p46
    %p49 = scmp.ne.s32.totalorder %s32, %s48
    %p50 = scmp.eq.s32.totalorder %s24, 0
    %p51 = por %p49, %p50
    %s53 = sadd.s32 %s52, 1
    %p56 = scmp.eq.s32.totalorder %s18, 1
    %p57 = scmp.ne.s32.totalorder %s52, %s54
    %p58 = scmp.eq.s32.totalorder %s18, 0
    %p59 = por %p57, %p58
    %p60 = scmp.ne.s32.totalorder %s52, %s54
    %p61 = scmp.eq.s32.totalorder %s23, 1
    %p62 = por %p60, %p61
    %p63 = scmp.ne.s32.totalorder %s54, %s55
    %p64 = scmp.eq.s32.totalorder %s23, 0
    %p65 = por %p63, %p64
    %p66 = scmp.ne.s32.totalorder %s54, %s55
    %p67 = scmp.eq.s32.totalorder %s24, 1
    %p68 = por %p66, %p67
    %p70 = scmp.ne.s32.totalorder %s55, %s69
    %p71 = scmp.eq.s32.totalorder %s24, 0
    %p72 = por %p70, %p71
    %s74 = sadd.s32 %s73, 1
    %p77 = scmp.eq.s32.totalorder %s18, 1
    %p78 = scmp.ne.s32.totalorder %s73, %s75
    %p79 = scmp.eq.s32.totalorder %s18, 0
    %p80 = por %p78, %p79
    %p81 = scmp.ne.s32.totalorder %s73, %s75
    %p82 = scmp.eq.s32.totalorder %s23, 1
    %p83 = por %p81, %p82
    %p84 = scmp.ne.s32.totalorder %s75, %s76
    %p85 = scmp.eq.s32.totalorder %s23, 0
    %p86 = por %p84, %p85
    %p87 = scmp.ne.s32.totalorder %s75, %s76
    %p88 = scmp.eq.s32.totalorder %s24, 1
    %p89 = por %p87, %p88
    %p91 = scmp.ne.s32.totalorder %s76, %s90
    %p92 = scmp.eq.s32.totalorder %s24, 0
    %p93 = por %p91, %p92
    %s95 = sadd.s32 %s94, 1
    %p98 = scmp.eq.s32.totalorder %s18, 1
    %p99 = scmp.ne.s32.totalorder %s94, %s96
    %p100 = scmp.eq.s32.totalorder %s18, 0
    %p101 = por %p99, %p100
    %p102 = scmp.ne.s32.totalorder %s94, %s96
    %p103 = scmp.eq.s32.totalorder %s23, 1
    %p104 = por %p102, %p103
    %p105 = scmp.ne.s32.totalorder %s96, %s97
    %p106 = scmp.eq.s32.totalorder %s23, 0
    %p107 = por %p105, %p106
    %p108 = scmp.ne.s32.totalorder %s96, %s97
    %p109 = scmp.eq.s32.totalorder %s24, 1
    %p110 = por %p108, %p109
    %p112 = scmp.ne.s32.totalorder %s97, %s111
    %p113 = scmp.eq.s32.totalorder %s24, 0
    %p114 = por %p112, %p113
    %s116 = sadd.s32 %s115, 1
    %p119 = scmp.eq.s32.totalorder %s18, 1
    %p120 = scmp.ne.s32.totalorder %s115, %s117
    %p121 = scmp.eq.s32.totalorder %s18, 0
    %p122 = por %p120, %p121
    %p123 = scmp.ne.s32.totalorder %s115, %s117
    %p124 = scmp.eq.s32.totalorder %s23, 1
    %p125 = por %p123, %p124
    %p126 = scmp.ne.s32.totalorder %s117, %s118
    %p127 = scmp.eq.s32.totalorder %s23, 0
    %p128 = por %p126, %p127
    %p129 = scmp.ne.s32.totalorder %s117, %s118
    %p130 = scmp.eq.s32.totalorder %s24, 1
    %p131 = por %p129, %p130
    %p133 = scmp.ne.s32.totalorder %s118, %s132
    %p134 = scmp.eq.s32.totalorder %s24, 0
    %p135 = por %p133, %p134
    %s137 = sadd.s32 %s136, 1
    %p140 = scmp.eq.s32.totalorder %s18, 1
    %p141 = scmp.ne.s32.totalorder %s136, %s138
    %p142 = scmp.eq.s32.totalorder %s18, 0
    %p143 = por %p141, %p142
    %p144 = scmp.ne.s32.totalorder %s136, %s138
    %p145 = scmp.eq.s32.totalorder %s23, 1
    %p146 = por %p144, %p145
    %p147 = scmp.ne.s32.totalorder %s138, %s139
    %p148 = scmp.eq.s32.totalorder %s23, 0
    %p149 = por %p147, %p148
    %p150 = scmp.ne.s32.totalorder %s138, %s139
    %p151 = scmp.eq.s32.totalorder %s24, 1
    %p152 = por %p150, %p151
    %p154 = scmp.ne.s32.totalorder %s139, %s153
    %p155 = scmp.eq.s32.totalorder %s24, 0
    %p156 = por %p154, %p155
    %s158 = sadd.s32 %s157, 1
    %p161 = scmp.eq.s32.totalorder %s18, 1
    %p162 = scmp.ne.s32.totalorder %s157, %s159
    %p163 = scmp.eq.s32.totalorder %s18, 0
    %p164 = por %p162, %p163
    %p165 = scmp.ne.s32.totalorder %s157, %s159
    %p166 = scmp.eq.s32.totalorder %s23, 1
    %p167 = por %p165, %p166
    %p168 = scmp.ne.s32.totalorder %s159, %s160
    %p169 = scmp.eq.s32.totalorder %s23, 0
    %p170 = por %p168, %p169
    %p171 = scmp.ne.s32.totalorder %s159, %s160
    %p172 = scmp.eq.s32.totalorder %s24, 1
    %p173 = por %p171, %p172
    %p175 = scmp.ne.s32.totalorder %s160, %s174
    %p176 = scmp.eq.s32.totalorder %s24, 0
    %p177 = por %p175, %p176
    %s179 = sadd.s32 %s178, 1
    %p182 = scmp.eq.s32.totalorder %s18, 1
    %p183 = scmp.ne.s32.totalorder %s178, %s180
    %p184 = scmp.eq.s32.totalorder %s18, 0
    %p185 = por %p183, %p184
    %p186 = scmp.ne.s32.totalorder %s178, %s180
    %p187 = scmp.eq.s32.totalorder %s23, 1
    %p188 = por %p186, %p187
    %p189 = scmp.ne.s32.totalorder %s180, %s181
    %p190 = scmp.eq.s32.totalorder %s23, 0
    %p191 = por %p189, %p190
    %p192 = scmp.ne.s32.totalorder %s180, %s181
    %p193 = scmp.eq.s32.totalorder %s24, 1
    %p194 = por %p192, %p193
    %p196 = scmp.ne.s32.totalorder %s181, %s195
    %p197 = scmp.eq.s32.totalorder %s24, 0
    %p198 = por %p196, %p197
    %s200 = sadd.s32 %s199, 1
    %p203 = scmp.eq.s32.totalorder %s18, 1
    %p204 = scmp.ne.s32.totalorder %s199, %s201
    %p205 = scmp.eq.s32.totalorder %s18, 0
    %p206 = por %p204, %p205
    %p207 = scmp.ne.s32.totalorder %s199, %s201
    %p208 = scmp.eq.s32.totalorder %s23, 1
    %p209 = por %p207, %p208
    %p210 = scmp.ne.s32.totalorder %s201, %s202
    %p211 = scmp.eq.s32.totalorder %s23, 0
    %p212 = por %p210, %p211
    %p213 = scmp.ne.s32.totalorder %s201, %s202
    %p214 = scmp.eq.s32.totalorder %s24, 1
    %p215 = por %p213, %p214
    %p217 = scmp.ne.s32.totalorder %s202, %s216
    %p218 = scmp.eq.s32.totalorder %s24, 0
    %p219 = por %p217, %p218
    %s221 = sadd.s32 %s220, 1
    %p224 = scmp.eq.s32.totalorder %s18, 1
    %p225 = scmp.ne.s32.totalorder %s220, %s222
    %p226 = scmp.eq.s32.totalorder %s18, 0
    %p227 = por %p225, %p226
    %p228 = scmp.ne.s32.totalorder %s220, %s222
    %p229 = scmp.eq.s32.totalorder %s23, 1
    %p230 = por %p228, %p229
    %p231 = scmp.ne.s32.totalorder %s222, %s223
    %p232 = scmp.eq.s32.totalorder %s23, 0
    %p233 = por %p231, %p232
    %p234 = scmp.ne.s32.totalorder %s222, %s223
    %p235 = scmp.eq.s32.totalorder %s24, 1
    %p236 = por %p234, %p235
    %p238 = scmp.ne.s32.totalorder %s223, %s237
    %p239 = scmp.eq.s32.totalorder %s24, 0
    %p240 = por %p238, %p239
    %s242 = sadd.s32 %s241, 1
    %p245 = scmp.eq.s32.totalorder %s18, 1
    %p246 = scmp.ne.s32.totalorder %s241, %s243
    %p247 = scmp.eq.s32.totalorder %s18, 0
    %p248 = por %p246, %p247
    %p249 = scmp.ne.s32.totalorder %s241, %s243
    %p250 = scmp.eq.s32.totalorder %s23, 1
    %p251 = por %p249, %p250
    %p252 = scmp.ne.s32.totalorder %s243, %s244
    %p253 = scmp.eq.s32.totalorder %s23, 0
    %p254 = por %p252, %p253
    %p255 = scmp.ne.s32.totalorder %s243, %s244
    %p256 = scmp.eq.s32.totalorder %s24, 1
    %p257 = por %p255, %p256
    %p259 = scmp.ne.s32.totalorder %s244, %s258
    %p260 = scmp.eq.s32.totalorder %s24, 0
    %p261 = por %p259, %p260
    %s262 = ssub.s32 %s18, %s25
    %p263 = scmp.eq.s32.totalorder %s262, 0
    %s265 = sadd.s32 %s264, 1
    %s266 = scalar_select %p263, %s264, %s265
    %p269 = pneg %p263
    %p270 = scmp.eq.s32.totalorder %s18, 1
    %p271 = por %p269, %p270
    %p272 = scmp.ne.s32.totalorder %s264, %s267
    %p273 = scmp.eq.s32.totalorder %s18, 0
    %p274 = por %p272, %p273
    %p275 = scmp.ne.s32.totalorder %s264, %s267
    %p276 = scmp.eq.s32.totalorder %s23, 1
    %p277 = por %p275, %p276
    %p278 = scmp.ne.s32.totalorder %s267, %s268
    %p279 = scmp.eq.s32.totalorder %s23, 0
    %p280 = por %p278, %p279
    %p281 = scmp.ne.s32.totalorder %s267, %s268
    %p282 = scmp.eq.s32.totalorder %s24, 1
    %p283 = por %p281, %p282
    %p285 = scmp.ne.s32.totalorder %s268, %s284
    %p286 = scmp.eq.s32.totalorder %s24, 0
    %p287 = por %p285, %p286
    %s288 = ssub.s32 %s18, %s25
    %p289 = scmp.eq.s32.totalorder %s288, 0
    %s291 = sadd.s32 %s290, 1
    %s292 = scalar_select %p289, %s290, %s291
    %p295 = pneg %p289
    %p296 = scmp.eq.s32.totalorder %s18, 1
    %p297 = por %p295, %p296
    %p298 = scmp.ne.s32.totalorder %s290, %s293
    %p299 = scmp.eq.s32.totalorder %s18, 0
    %p300 = por %p298, %p299
    %p301 = scmp.ne.s32.totalorder %s290, %s293
    %p302 = scmp.eq.s32.totalorder %s23, 1
    %p303 = por %p301, %p302
    %p304 = scmp.ne.s32.totalorder %s293, %s294
    %p305 = scmp.eq.s32.totalorder %s23, 0
    %p306 = por %p304, %p305
    %p307 = scmp.ne.s32.totalorder %s293, %s294
    %p308 = scmp.eq.s32.totalorder %s24, 1
    %p309 = por %p307, %p308
    %p311 = scmp.ne.s32.totalorder %s294, %s310
    %p312 = scmp.eq.s32.totalorder %s24, 0
    %p313 = por %p311, %p312
    %p314 = scmp.le.s32.totalorder 1, %s18
    %p315 = scmp.lt.s32.totalorder %s18, 3
    %p316 = pnand %p314, %p315
    %p317 = pneg %p316
    // Predicated region
    $region9: #{linformer_encoder_forward.5} parent=5 // pred_check
      _
    $region10: #{linformer_encoder_forward.5} parent=5 // pred_check_branch
      %319 = sbr.rel (%p316) target = $region12
    $region11: #{linformer_encoder_forward.5} parent=5 // pred_region
      %s320 = ssub.s32 %s18, 1
      // Predicated region
      $region13: #{linformer_encoder_forward.5} parent=11 // pred_check
        %p321 = pneg %p65
      $region14: #{linformer_encoder_forward.5} parent=11 // pred_check_branch
        %323 = sbr.rel (%p321) target = $region16
      $region15: #{linformer_encoder_forward.5} parent=11 // pred_region
        _
      $region16: #{linformer_encoder_forward.5} parent=11 // pred_fallthru
        _
      // Predicated region
      $region17: #{linformer_encoder_forward.5} parent=11 // pred_check
        %p324 = pneg %p86
      $region18: #{linformer_encoder_forward.5} parent=11 // pred_check_branch
        %326 = sbr.rel (%p324) target = $region20
      $region19: #{linformer_encoder_forward.5} parent=11 // pred_region
        _
      $region20: #{linformer_encoder_forward.5} parent=11 // pred_fallthru
        _
      // Predicated region
      $region21: #{linformer_encoder_forward.5} parent=11 // pred_check
        %p327 = pneg %p107
      $region22: #{linformer_encoder_forward.5} parent=11 // pred_check_branch
        %329 = sbr.rel (%p327) target = $region24
      $region23: #{linformer_encoder_forward.5} parent=11 // pred_region
        _
      $region24: #{linformer_encoder_forward.5} parent=11 // pred_fallthru
        _
      // Predicated region
      $region25: #{linformer_encoder_forward.5} parent=11 // pred_check
        %p330 = pneg %p128
      $region26: #{linformer_encoder_forward.5} parent=11 // pred_check_branch
        %332 = sbr.rel (%p330) target = $region28
      $region27: #{linformer_encoder_forward.5} parent=11 // pred_region
        _
      $region28: #{linformer_encoder_forward.5} parent=11 // pred_fallthru
        _
      // Predicated region
      $region29: #{linformer_encoder_forward.5} parent=11 // pred_check
        %p333 = pneg %p149
      $region30: #{linformer_encoder_forward.5} parent=11 // pred_check_branch
        %335 = sbr.rel (%p333) target = $region32
      $region31: #{linformer_encoder_forward.5} parent=11 // pred_region
        _
      $region32: #{linformer_encoder_forward.5} parent=11 // pred_fallthru
        _
      // Predicated region
      $region33: #{linformer_encoder_forward.5} parent=11 // pred_check
        %p336 = pneg %p170
      $region34: #{linformer_encoder_forward.5} parent=11 // pred_check_branch
        %338 = sbr.rel (%p336) target = $region36
      $region35: #{linformer_encoder_forward.5} parent=11 // pred_region
        _
      $region36: #{linformer_encoder_forward.5} parent=11 // pred_fallthru
        _
      // Predicated region
      $region37: #{linformer_encoder_forward.5} parent=11 // pred_check
        %p339 = pneg %p191
      $region38: #{linformer_encoder_forward.5} parent=11 // pred_check_branch
        %341 = sbr.rel (%p339) target = $region40
      $region39: #{linformer_encoder_forward.5} parent=11 // pred_region
        _
      $region40: #{linformer_encoder_forward.5} parent=11 // pred_fallthru
        _
      // Predicated region
      $region41: #{linformer_encoder_forward.5} parent=11 // pred_check
        %p342 = pneg %p212
      $region42: #{linformer_encoder_forward.5} parent=11 // pred_check_branch
        %344 = sbr.rel (%p342) target = $region44
      $region43: #{linformer_encoder_forward.5} parent=11 // pred_region
        _
      $region44: #{linformer_encoder_forward.5} parent=11 // pred_fallthru
        _
      // Predicated region
      $region45: #{linformer_encoder_forward.5} parent=11 // pred_check
        %p345 = pneg %p233
      $region46: #{linformer_encoder_forward.5} parent=11 // pred_check_branch
        %347 = sbr.rel (%p345) target = $region48
      $region47: #{linformer_encoder_forward.5} parent=11 // pred_region
        _
      $region48: #{linformer_encoder_forward.5} parent=11 // pred_fallthru
        _
      // Predicated region
      $region49: #{linformer_encoder_forward.5} parent=11 // pred_check
        %p348 = pneg %p254
      $region50: #{linformer_encoder_forward.5} parent=11 // pred_check_branch
        %350 = sbr.rel (%p348) target = $region52
      $region51: #{linformer_encoder_forward.5} parent=11 // pred_region
        _
      $region52: #{linformer_encoder_forward.5} parent=11 // pred_fallthru
        _
    $region12: #{linformer_encoder_forward.5} parent=5 // pred_fallthru
      _
    %p351 = scmp.lt.s32.totalorder %s18, 2
    // Predicated region
    $region53: #{linformer_encoder_forward.5} parent=5 // pred_check
      %p352 = pneg %p351
    $region54: #{linformer_encoder_forward.5} parent=5 // pred_check_branch
      %354 = sbr.rel (%p352) target = $region56
    $region55: #{linformer_encoder_forward.5} parent=5 // pred_region
      // Predicated region
      $region57: #{linformer_encoder_forward.5} parent=55 // pred_check
        %p355 = pneg %p38
      $region58: #{linformer_encoder_forward.5} parent=55 // pred_check_branch
        %357 = sbr.rel (%p355) target = $region60
      $region59: #{linformer_encoder_forward.5} parent=55 // pred_region
        %p358 = scmp.lt.s32.totalorder %s18, 1
        %s359 = scalar_select %p358, %s18, 1
        %s360 = smul.addr %s359, 8
        %s361 = scalar_lea.vmem %s0, %s360
      $region60: #{linformer_encoder_forward.5} parent=55 // pred_fallthru
        _
      // Predicated region
      $region61: #{linformer_encoder_forward.5} parent=55 // pred_check
        %p362 = pneg %p274
      $region62: #{linformer_encoder_forward.5} parent=55 // pred_check_branch
        %364 = sbr.rel (%p362) target = $region64
      $region63: #{linformer_encoder_forward.5} parent=55 // pred_region
        %p365 = scmp.lt.s32.totalorder %s18, 1
        %s366 = scalar_select %p365, %s18, 1
        %s367 = scalar_lea.vmem %s11, %s366
      $region64: #{linformer_encoder_forward.5} parent=55 // pred_fallthru
        _
    $region56: #{linformer_encoder_forward.5} parent=5 // pred_fallthru
      _
    %p368 = scmp.le.s32.totalorder 1, %s18
    %p369 = scmp.lt.s32.totalorder %s18, 3
    %p370 = pnand %p368, %p369
    %p371 = pneg %p370
    // Predicated region
    $region65: #{linformer_encoder_forward.5} parent=5 // pred_check
      _
    $region66: #{linformer_encoder_forward.5} parent=5 // pred_check_branch
      %373 = sbr.rel (%p370) target = $region68
    $region67: #{linformer_encoder_forward.5} parent=5 // pred_region
      %s374 = ssub.s32 %s18, 1
      %p375 = scmp.lt.s32.totalorder %s23, 1
      %s376 = scalar_select %p375, %s23, 1
      %s377 = smul.addr %s376, 8
      %s378 = scalar_lea.vmem %s0, %s377
      %p379 = pneg %p44
      %p380 = pneg %p41
      %p381 = pneg %p65
      %p382 = pneg %p62
      %p383 = pneg %p86
      %p384 = pneg %p83
      %p385 = pneg %p107
      %p386 = pneg %p104
      %p387 = pneg %p128
      %p388 = pneg %p125
      %p389 = pneg %p149
      %p390 = pneg %p146
      %p391 = pneg %p170
      %p392 = pneg %p167
      %p393 = pneg %p191
      %p394 = pneg %p188
      %p395 = pneg %p212
      %p396 = pneg %p209
      %p397 = pneg %p233
      %p398 = pneg %p230
      %p399 = pneg %p254
      %p400 = pneg %p251
      %p401 = scmp.lt.s32.totalorder %s23, 1
      %s402 = scalar_select %p401, %s23, 1
      %s403 = scalar_lea.vmem %s11, %s402
      %p404 = pneg %p280
      %p405 = pneg %p277
      %p406 = pneg %p306
      %p407 = pneg %p303
      %p408 = scmp.lt.s32.totalorder %s23, 1
      %s409 = scalar_select %p408, %s23, 1
      %s410 = smul.addr %s409, 8
      %s411 = scalar_lea.vmem %s12, %s410
      %p412 = scmp.lt.s32.totalorder %s23, 1
      %s413 = scalar_select %p412, %s23, 1
      %s414 = smul.addr %s413, 8
      %s415 = scalar_lea.vmem %s0, %s414
      %p416 = scmp.lt.s32.totalorder %s23, 1
      %s417 = scalar_select %p416, %s23, 1
      %s418 = scalar_lea.vmem %s11, %s417
      %p419 = scmp.lt.s32.totalorder %s23, 1
      %s420 = scalar_select %p419, %s23, 1
      %s421 = smul.addr %s420, 8
      %s422 = scalar_lea.vmem %s12, %s421
      %v424 = vld [vmem:[%s415] sm:$0xff]
      %v425 = vld [vmem:[%s1] sm:$0x1]
      %v426 = vld [vmem:[%s2] sm:$0x1]
      %vm427 = vcmask 261120
      %v428 = vsel %vm427, %v424, 0.0
      %429 = vadd.xlane.f32.xlu0 %v428
      %v430 = vpop.xlane.xlu0 %429
      %v431 = vrcp.pop 32.0
      %v432 = vmul.f32 32.0, %v431
      %v433 = vsub.f32 1.0, %v432
      %v434 = vmul.f32 %v431, %v433
      %v435 = vadd.f32 %v431, %v434
      %vm436 = vweird.f32 %v431
      %v437 = vsel %vm436, %v431, %v435
      %v438 = vmul.f32 %v430, %v437
      %v439 = vsub.f32 %v424, %v438
      %v440 = vmul.f32 %v439, %v439
      %v441 = vsel %vm427, %v440, 0.0
      %442 = vadd.xlane.f32.xlu0 %v441
      %v443 = vpop.xlane.xlu0 %442
      %v444 = vrcp.pop 31.0
      %v445 = vmul.f32 31.0, %v444
      %v446 = vsub.f32 1.0, %v445
      %v447 = vmul.f32 %v444, %v446
      %v448 = vadd.f32 %v444, %v447
      %vm449 = vweird.f32 %v444
      %v450 = vsel %vm449, %v444, %v448
      %v451 = vmul.f32 %v443, %v450
      %v453 = vperm.slane %v425, 0
      %v455 = vmul.f32 %v453, %v439
      %v456 = vrsqrt.pop %v451
      %v457 = vmul.f32 %v456, %v451
      %v458 = vmul.f32 %v457, %v456
      %v459 = vmul.f32 0.5, %v458
      %v460 = vsub.f32 1.5, %v459
      %v461 = vmul.f32 %v456, %v460
      %v462 = vmul.f32 %v451, %v461
      %vm463 = vcmp.eq.f32.partialorder %v451, inf
      %v464 = vsel %vm463, %v451, %v462
      %vm465 = vcmp.eq.f32.partialorder %v451, 0.0
      %v466 = vand.u32 %v451, 2147483648
      %v467 = vsel %vm465, %v466, %v464
      %v468 = vadd.f32 %v467, 1e-06
      %v469 = vrcp.pop %v468
      %v470 = vmul.f32 %v468, %v469
      %v471 = vsub.f32 1.0, %v470
      %v472 = vmul.f32 %v469, %v471
      %v473 = vadd.f32 %v469, %v472
      %vm474 = vweird.f32 %v468
      %vm475 = vweird.f32 %v469
      %vm476 = vmor %vm474, %vm475
      %v477 = vsel %vm476, %v469, %v473
      %v478 = vand.u32 2147483647, %v468
      %vm479 = vcmp.eq.f32.partialorder %v478, 8.507059e+37
      %v480 = vand.u32 %v468, 2147483648
      %v481 = vor.u32 1.1754944e-38, %v480
      %v482 = vsel %vm479, %v481, %v477
      %v483 = vmul.f32 %v455, %v482
      %v485 = vperm.slane %v426, 0
      %v487 = vadd.f32 %v483, %v485
      %v488 = vpack.c.bf16 %v487, %v487
      %v489 = vld [vmem:[%s3] sm:$0xf]
      %v490 = vld [vmem:[%s3 + $0x4] sm:$0xf]
      %v491 = vld [vmem:[%s3 + $0x8] sm:$0xf]
      %v492 = vld [vmem:[%s3 + $0xc] sm:$0xf]
      %v493 = vld [vmem:[%s4] sm:$0x1]
      %v495 = vperm.slane %v493, 0
      %v501 = vunpack.c.l.b16 %v489
      %v502 = vunpack.c.l.b16 %v490
      %v503 = vunpack.c.l.b16 %v491
      %v504 = vunpack.c.l.b16 %v492
      %v505 = vpack.c.b16 %v502, %v501
      %v506 = vpack.c.b16 %v504, %v503
      %v510 = vsel %vm427, %v488, 0
      %512 = vmatpush.bf16.msra.mxu0 0
      %513 = vmatpush.bf16.msra.mxu0 0
      %514 = vmatpush.bf16.msra.mxu0 0
      %515 = vmatpush.bf16.msra.mxu0 0
      %516 = vmatpush.bf16.msra.mxu0 0
      %517 = vmatpush.bf16.msra.mxu0 0
      %518 = vmatpush.bf16.msra.mxu0 %v506
      %519 = vmatpush.bf16.msra.mxu0 %v505
      %520 = vmatmul.bf16.gmra.mxu0 %v510
      %v521 = vpop.f32.mrf.mxu0
      %v522 = vadd.f32 %v495, %v521
      %v523 = vpop.f32.mrf.mxu0
      %524 = vdwg.mxu0
      %v525 = vpack.c.bf16 %v522, %v522
      %v526 = vld [vmem:[%s418] sm:$0x1]
      %v527 = vld [vmem:[%s5] sm:$0xf]
      %v528 = vld [vmem:[%s5 + $0x4] sm:$0xf]
      %v529 = vld [vmem:[%s5 + $0x8] sm:$0xf]
      %v530 = vld [vmem:[%s5 + $0xc] sm:$0xf]
      %v531 = vld [vmem:[%s6] sm:$0x1]
      %v533 = vperm.slane %v531, 0
      %v536 = vunpack.c.l.b16 %v525
      %v537 = vpack.c.b16 %v536, %v536
      %538 = vrot.lane.b32.xlu0 %v537, 96
      %v539 = vpop.permute.xlu0 %538
      %v544 = vunpack.c.l.b16 %v527
      %v545 = vunpack.c.l.b16 %v528
      %v546 = vunpack.c.l.b16 %v529
      %v547 = vunpack.c.l.b16 %v530
      %v548 = vpack.c.b16 %v545, %v544
      %v549 = vpack.c.b16 %v547, %v546
      %v553 = vsel %vm427, %v539, 0
      %555 = vmatpush.bf16.msra.mxu0 0
      %556 = vmatpush.bf16.msra.mxu0 0
      %557 = vmatpush.bf16.msra.mxu0 0
      %558 = vmatpush.bf16.msra.mxu0 0
      %559 = vmatpush.bf16.msra.mxu0 0
      %560 = vmatpush.bf16.msra.mxu0 0
      %561 = vmatpush.bf16.msra.mxu0 %v549
      %562 = vmatpush.bf16.msra.mxu0 %v548
      %563 = vmatmul.bf16.gmra.mxu0 %v553
      %v564 = vpop.f32.mrf.mxu0
      %v565 = vadd.f32 %v533, %v564
      %v566 = vpop.f32.mrf.mxu0
      %567 = vdwg.mxu0
      %v568 = vld [vmem:[%s7] sm:$0xf]
      %v569 = vld [vmem:[%s7 + $0x4] sm:$0xf]
      %v570 = vld [vmem:[%s7 + $0x8] sm:$0xf]
      %v571 = vld [vmem:[%s7 + $0xc] sm:$0xf]
      %v572 = vld [vmem:[%s8] sm:$0x1]
      %v574 = vperm.slane %v572, 0
      %576 = vrot.lane.b32.xlu0 %v537, 64
      %v577 = vpop.permute.xlu0 %576
      %v582 = vunpack.c.l.b16 %v568
      %v583 = vunpack.c.l.b16 %v569
      %v584 = vunpack.c.l.b16 %v570
      %v585 = vunpack.c.l.b16 %v571
      %v586 = vpack.c.b16 %v583, %v582
      %v587 = vpack.c.b16 %v585, %v584
      %v591 = vsel %vm427, %v577, 0
      %593 = vmatpush.bf16.msra.mxu0 0
      %594 = vmatpush.bf16.msra.mxu0 0
      %595 = vmatpush.bf16.msra.mxu0 0
      %596 = vmatpush.bf16.msra.mxu0 0
      %597 = vmatpush.bf16.msra.mxu0 0
      %598 = vmatpush.bf16.msra.mxu0 0
      %599 = vmatpush.bf16.msra.mxu0 %v587
      %600 = vmatpush.bf16.msra.mxu0 %v586
      %601 = vmatmul.bf16.gmra.mxu0 %v591
      %v602 = vpop.f32.mrf.mxu0
      %v603 = vadd.f32 %v574, %v602
      %v604 = vpop.f32.mrf.mxu0
      %605 = vdwg.mxu0
      %v606 = vpack.c.bf16 %v565, %v565
      %v607 = vpack.c.bf16 %v603, %v603
      %608 = vxpose.xlu0.c.b16.start [1/8] %v606, 128
      %609 = vxpose.xlu0.c.b16.cont [2/8] 0, 128
      %610 = vxpose.xlu0.c.b16.cont [3/8] 0, 128
      %611 = vxpose.xlu0.c.b16.cont [4/8] 0, 128
      %612 = vxpose.xlu0.c.b16.cont [5/8] 0, 128
      %613 = vxpose.xlu0.c.b16.cont [6/8] 0, 128
      %614 = vxpose.xlu0.c.b16.cont [7/8] 0, 128
      %615 = vxpose.xlu0.c.b16.end [8/8] 0, 128
      %v616 = vpop.trf.xlu0
      %v617 = vpop.trf.xlu0
      %v618 = vpop.trf.xlu0
      %v619 = vpop.trf.xlu0
      %v620 = vpop.trf.xlu0
      %v621 = vpop.trf.xlu0
      %v622 = vpop.trf.xlu0
      %v623 = vpop.trf.xlu0
      %vm624 = vcmask 64512
      %v626 = vsel %vm624, %v616, 0
      %vm628 = vcmask 1043456
      %v629 = vsel %vm628, %v539, 0
      %631 = vmatpush.bf16.msra.mxu0 0
      %632 = vmatpush.bf16.msra.mxu0 0
      %633 = vmatpush.bf16.msra.mxu0 0
      %634 = vmatpush.bf16.msra.mxu0 0
      %635 = vmatpush.bf16.msra.mxu0 0
      %636 = vmatpush.bf16.msra.mxu0 0
      %637 = vmatpush.bf16.msra.mxu0 0
      %638 = vmatpush.bf16.msra.mxu0 %v629
      %639 = vmatmul.bf16.gmra.mxu0 %v626
      %v640 = vpop.f32.mrf.mxu0
      %v641 = vadd.f32 0.0, %v640
      %v642 = vpop.f32.mrf.mxu0
      %643 = vdwg.mxu0
      %v644 = vpack.c.bf16 %v641, %v641
      %v646 = vsel %vm624, %v525, 0
      %v649 = vsel %vm624, %v644, 0
      %651 = vmatpush.bf16.xpose.msra.mxu0 0
      %652 = vmatpush.bf16.xpose.msra.mxu0 0
      %653 = vmatpush.bf16.xpose.msra.mxu0 0
      %654 = vmatpush.bf16.xpose.msra.mxu0 0
      %655 = vmatpush.bf16.xpose.msra.mxu0 0
      %656 = vmatpush.bf16.xpose.msra.mxu0 0
      %657 = vmatpush.bf16.xpose.msra.mxu0 0
      %658 = vmatpush.bf16.xpose.msra.mxu0 %v649
      %659 = vmatmul.bf16.gmra.mxu0 %v646
      %v660 = vpop.f32.mrf.mxu0
      %v661 = vadd.f32 0.0, %v660
      %v662 = vpop.f32.mrf.mxu0
      %663 = vdwg.mxu0
      %v664 = vmul.f32 %v661, 0.35355338
      %v666 = vperm.slane %v526, 0
      %v668 = vadd.f32 %v664, %v666
      %669 = vxpose.xlu0.c.b16.start [1/8] %v607, 128
      %670 = vxpose.xlu0.c.b16.cont [2/8] 0, 128
      %671 = vxpose.xlu0.c.b16.cont [3/8] 0, 128
      %672 = vxpose.xlu0.c.b16.cont [4/8] 0, 128
      %673 = vxpose.xlu0.c.b16.cont [5/8] 0, 128
      %674 = vxpose.xlu0.c.b16.cont [6/8] 0, 128
      %675 = vxpose.xlu0.c.b16.cont [7/8] 0, 128
      %676 = vxpose.xlu0.c.b16.end [8/8] 0, 128
      %v677 = vpop.trf.xlu0
      %v678 = vpop.trf.xlu0
      %v679 = vpop.trf.xlu0
      %v680 = vpop.trf.xlu0
      %v681 = vpop.trf.xlu0
      %v682 = vpop.trf.xlu0
      %v683 = vpop.trf.xlu0
      %v684 = vpop.trf.xlu0
      %v686 = vsel %vm624, %v677, 0
      %v688 = vsel %vm628, %v577, 0
      %690 = vmatpush.bf16.msra.mxu0 0
      %691 = vmatpush.bf16.msra.mxu0 0
      %692 = vmatpush.bf16.msra.mxu0 0
      %693 = vmatpush.bf16.msra.mxu0 0
      %694 = vmatpush.bf16.msra.mxu0 0
      %695 = vmatpush.bf16.msra.mxu0 0
      %696 = vmatpush.bf16.msra.mxu0 0
      %697 = vmatpush.bf16.msra.mxu0 %v688
      %698 = vmatmul.bf16.gmra.mxu0 %v686
      %v699 = vpop.f32.mrf.mxu0
      %v700 = vadd.f32 0.0, %v699
      %v701 = vpop.f32.mrf.mxu0
      %702 = vdwg.mxu0
      %v703 = vpack.c.bf16 %v700, %v700
      %vm704 = vcmask 31744
      %v705 = vsel %vm704, %v668, -inf
      %706 = vmax.xlane.f32.xlu0 %v705
      %v707 = vpop.xlane.xlu0 %706
      %v708 = vsub.f32 %v668, %v707
      %v709 = vmul.f32 %v708, 1.442695
      %v710 = vpow.pop %v709
      %v711 = vsel %vm704, %v710, 0.0
      %712 = vadd.xlane.f32.xlu0 %v711
      %v713 = vpop.xlane.xlu0 %712
      %v714 = vrcp.pop %v713
      %v715 = vmul.f32 %v713, %v714
      %v716 = vsub.f32 1.0, %v715
      %v717 = vmul.f32 %v714, %v716
      %v718 = vadd.f32 %v714, %v717
      %vm719 = vweird.f32 %v713
      %vm720 = vweird.f32 %v714
      %vm721 = vmor %vm719, %vm720
      %v722 = vsel %vm721, %v714, %v718
      %v723 = vand.u32 2147483647, %v713
      %vm724 = vcmp.eq.f32.partialorder %v723, 8.507059e+37
      %v725 = vand.u32 %v713, 2147483648
      %v726 = vor.u32 1.1754944e-38, %v725
      %v727 = vsel %vm724, %v726, %v722
      %v728 = vmul.f32 %v710, %v727
      %v729 = vpack.c.bf16 %v728, %v728
      %v731 = vsel %vm704, %v729, 0
      %vm733 = vcmask 1041408
      %v735 = vsel %vm733, %v703, 0
      %737 = vmatpush.bf16.msra.mxu0 0
      %738 = vmatpush.bf16.msra.mxu0 0
      %739 = vmatpush.bf16.msra.mxu0 0
      %740 = vmatpush.bf16.msra.mxu0 0
      %741 = vmatpush.bf16.msra.mxu0 0
      %742 = vmatpush.bf16.msra.mxu0 0
      %743 = vmatpush.bf16.msra.mxu0 0
      %744 = vmatpush.bf16.msra.mxu0 %v735
      %745 = vmatmul.bf16.gmra.mxu0 %v731
      %v746 = vpop.f32.mrf.mxu0
      %v747 = vadd.f32 0.0, %v746
      %v748 = vpop.f32.mrf.mxu0
      %749 = vdwg.mxu0
      %v751 = vunpack.c.l.b16 %v606
      %v752 = vpack.c.b16 %v751, %v751
      %753 = vrot.lane.b32.xlu0 %v752, 124
      %v754 = vpop.permute.xlu0 %753
      %756 = vxpose.xlu0.c.b16.start [1/8] %v754, 128
      %757 = vxpose.xlu0.c.b16.cont [2/8] 0, 128
      %758 = vxpose.xlu0.c.b16.cont [3/8] 0, 128
      %759 = vxpose.xlu0.c.b16.cont [4/8] 0, 128
      %760 = vxpose.xlu0.c.b16.cont [5/8] 0, 128
      %761 = vxpose.xlu0.c.b16.cont [6/8] 0, 128
      %762 = vxpose.xlu0.c.b16.cont [7/8] 0, 128
      %763 = vxpose.xlu0.c.b16.end [8/8] 0, 128
      %v764 = vpop.trf.xlu0
      %v765 = vpop.trf.xlu0
      %v766 = vpop.trf.xlu0
      %v767 = vpop.trf.xlu0
      %v768 = vpop.trf.xlu0
      %v769 = vpop.trf.xlu0
      %v770 = vpop.trf.xlu0
      %v771 = vpop.trf.xlu0
      %772 = vrot.lane.b32.xlu0 %v537, 88
      %v773 = vpop.permute.xlu0 %772
      %v775 = vsel %vm624, %v764, 0
      %v778 = vsel %vm628, %v773, 0
      %780 = vmatpush.bf16.msra.mxu0 0
      %781 = vmatpush.bf16.msra.mxu0 0
      %782 = vmatpush.bf16.msra.mxu0 0
      %783 = vmatpush.bf16.msra.mxu0 0
      %784 = vmatpush.bf16.msra.mxu0 0
      %785 = vmatpush.bf16.msra.mxu0 0
      %786 = vmatpush.bf16.msra.mxu0 0
      %787 = vmatpush.bf16.msra.mxu0 %v778
      %788 = vmatmul.bf16.gmra.mxu0 %v775
      %v789 = vpop.f32.mrf.mxu0
      %v790 = vadd.f32 0.0, %v789
      %v791 = vpop.f32.mrf.mxu0
      %792 = vdwg.mxu0
      %v793 = vpack.c.bf16 %v790, %v790
      %794 = vrot.lane.b32.xlu0 %v537, 120
      %v795 = vpop.permute.xlu0 %794
      %v797 = vsel %vm624, %v795, 0
      %v800 = vsel %vm624, %v793, 0
      %802 = vmatpush.bf16.xpose.msra.mxu0 0
      %803 = vmatpush.bf16.xpose.msra.mxu0 0
      %804 = vmatpush.bf16.xpose.msra.mxu0 0
      %805 = vmatpush.bf16.xpose.msra.mxu0 0
      %806 = vmatpush.bf16.xpose.msra.mxu0 0
      %807 = vmatpush.bf16.xpose.msra.mxu0 0
      %808 = vmatpush.bf16.xpose.msra.mxu0 0
      %809 = vmatpush.bf16.xpose.msra.mxu0 %v800
      %810 = vmatmul.bf16.gmra.mxu0 %v797
      %v811 = vpop.f32.mrf.mxu0
      %v812 = vadd.f32 0.0, %v811
      %v813 = vpop.f32.mrf.mxu0
      %814 = vdwg.mxu0
      %v815 = vmul.f32 %v812, 0.35355338
      %v816 = vadd.f32 %v815, %v666
      %v818 = vunpack.c.l.b16 %v607
      %v819 = vpack.c.b16 %v818, %v818
      %820 = vrot.lane.b32.xlu0 %v819, 124
      %v821 = vpop.permute.xlu0 %820
      %823 = vxpose.xlu0.c.b16.start [1/8] %v821, 128
      %824 = vxpose.xlu0.c.b16.cont [2/8] 0, 128
      %825 = vxpose.xlu0.c.b16.cont [3/8] 0, 128
      %826 = vxpose.xlu0.c.b16.cont [4/8] 0, 128
      %827 = vxpose.xlu0.c.b16.cont [5/8] 0, 128
      %828 = vxpose.xlu0.c.b16.cont [6/8] 0, 128
      %829 = vxpose.xlu0.c.b16.cont [7/8] 0, 128
      %830 = vxpose.xlu0.c.b16.end [8/8] 0, 128
      %v831 = vpop.trf.xlu0
      %v832 = vpop.trf.xlu0
      %v833 = vpop.trf.xlu0
      %v834 = vpop.trf.xlu0
      %v835 = vpop.trf.xlu0
      %v836 = vpop.trf.xlu0
      %v837 = vpop.trf.xlu0
      %v838 = vpop.trf.xlu0
      %839 = vrot.lane.b32.xlu0 %v537, 56
      %v840 = vpop.permute.xlu0 %839
      %v842 = vsel %vm624, %v831, 0
      %v845 = vsel %vm628, %v840, 0
      %847 = vmatpush.bf16.msra.mxu0 0
      %848 = vmatpush.bf16.msra.mxu0 0
      %849 = vmatpush.bf16.msra.mxu0 0
      %850 = vmatpush.bf16.msra.mxu0 0
      %851 = vmatpush.bf16.msra.mxu0 0
      %852 = vmatpush.bf16.msra.mxu0 0
      %853 = vmatpush.bf16.msra.mxu0 0
      %854 = vmatpush.bf16.msra.mxu0 %v845
      %855 = vmatmul.bf16.gmra.mxu0 %v842
      %v856 = vpop.f32.mrf.mxu0
      %v857 = vadd.f32 0.0, %v856
      %v858 = vpop.f32.mrf.mxu0
      %859 = vdwg.mxu0
      %v860 = vpack.c.bf16 %v857, %v857
      %v861 = vsel %vm704, %v816, -inf
      %862 = vmax.xlane.f32.xlu0 %v861
      %v863 = vpop.xlane.xlu0 %862
      %v864 = vsub.f32 %v816, %v863
      %v865 = vmul.f32 %v864, 1.442695
      %v866 = vpow.pop %v865
      %v867 = vsel %vm704, %v866, 0.0
      %868 = vadd.xlane.f32.xlu0 %v867
      %v869 = vpop.xlane.xlu0 %868
      %v870 = vrcp.pop %v869
      %v871 = vmul.f32 %v869, %v870
      %v872 = vsub.f32 1.0, %v871
      %v873 = vmul.f32 %v870, %v872
      %v874 = vadd.f32 %v870, %v873
      %vm875 = vweird.f32 %v869
      %vm876 = vweird.f32 %v870
      %vm877 = vmor %vm875, %vm876
      %v878 = vsel %vm877, %v870, %v874
      %v879 = vand.u32 2147483647, %v869
      %vm880 = vcmp.eq.f32.partialorder %v879, 8.507059e+37
      %v881 = vand.u32 %v869, 2147483648
      %v882 = vor.u32 1.1754944e-38, %v881
      %v883 = vsel %vm880, %v882, %v878
      %v884 = vmul.f32 %v866, %v883
      %v885 = vpack.c.bf16 %v884, %v884
      %v887 = vsel %vm704, %v885, 0
      %v890 = vsel %vm733, %v860, 0
      %892 = vmatpush.bf16.msra.mxu0 0
      %893 = vmatpush.bf16.msra.mxu0 0
      %894 = vmatpush.bf16.msra.mxu0 0
      %895 = vmatpush.bf16.msra.mxu0 0
      %896 = vmatpush.bf16.msra.mxu0 0
      %897 = vmatpush.bf16.msra.mxu0 0
      %898 = vmatpush.bf16.msra.mxu0 0
      %899 = vmatpush.bf16.msra.mxu0 %v890
      %900 = vmatmul.bf16.gmra.mxu0 %v887
      %v901 = vpop.f32.mrf.mxu0
      %v902 = vadd.f32 0.0, %v901
      %v903 = vpop.f32.mrf.mxu0
      %904 = vdwg.mxu0
      %905 = vrot.lane.b32.xlu0 %v752, 120
      %v906 = vpop.permute.xlu0 %905
      %908 = vxpose.xlu0.c.b16.start [1/8] %v906, 128
      %909 = vxpose.xlu0.c.b16.cont [2/8] 0, 128
      %910 = vxpose.xlu0.c.b16.cont [3/8] 0, 128
      %911 = vxpose.xlu0.c.b16.cont [4/8] 0, 128
      %912 = vxpose.xlu0.c.b16.cont [5/8] 0, 128
      %913 = vxpose.xlu0.c.b16.cont [6/8] 0, 128
      %914 = vxpose.xlu0.c.b16.cont [7/8] 0, 128
      %915 = vxpose.xlu0.c.b16.end [8/8] 0, 128
      %v916 = vpop.trf.xlu0
      %v917 = vpop.trf.xlu0
      %v918 = vpop.trf.xlu0
      %v919 = vpop.trf.xlu0
      %v920 = vpop.trf.xlu0
      %v921 = vpop.trf.xlu0
      %v922 = vpop.trf.xlu0
      %v923 = vpop.trf.xlu0
      %924 = vrot.lane.b32.xlu0 %v537, 80
      %v925 = vpop.permute.xlu0 %924
      %v927 = vsel %vm624, %v916, 0
      %v930 = vsel %vm628, %v925, 0
      %932 = vmatpush.bf16.msra.mxu0 0
      %933 = vmatpush.bf16.msra.mxu0 0
      %934 = vmatpush.bf16.msra.mxu0 0
      %935 = vmatpush.bf16.msra.mxu0 0
      %936 = vmatpush.bf16.msra.mxu0 0
      %937 = vmatpush.bf16.msra.mxu0 0
      %938 = vmatpush.bf16.msra.mxu0 0
      %939 = vmatpush.bf16.msra.mxu0 %v930
      %940 = vmatmul.bf16.gmra.mxu0 %v927
      %v941 = vpop.f32.mrf.mxu0
      %v942 = vadd.f32 0.0, %v941
      %v943 = vpop.f32.mrf.mxu0
      %944 = vdwg.mxu0
      %v945 = vpack.c.bf16 %v942, %v942
      %946 = vrot.lane.b32.xlu0 %v537, 112
      %v947 = vpop.permute.xlu0 %946
      %v949 = vsel %vm624, %v947, 0
      %v952 = vsel %vm624, %v945, 0
      %954 = vmatpush.bf16.xpose.msra.mxu0 0
      %955 = vmatpush.bf16.xpose.msra.mxu0 0
      %956 = vmatpush.bf16.xpose.msra.mxu0 0
      %957 = vmatpush.bf16.xpose.msra.mxu0 0
      %958 = vmatpush.bf16.xpose.msra.mxu0 0
      %959 = vmatpush.bf16.xpose.msra.mxu0 0
      %960 = vmatpush.bf16.xpose.msra.mxu0 0
      %961 = vmatpush.bf16.xpose.msra.mxu0 %v952
      %962 = vmatmul.bf16.gmra.mxu0 %v949
      %v963 = vpop.f32.mrf.mxu0
      %v964 = vadd.f32 0.0, %v963
      %v965 = vpop.f32.mrf.mxu0
      %966 = vdwg.mxu0
      %v967 = vmul.f32 %v964, 0.35355338
      %v968 = vadd.f32 %v967, %v666
      %969 = vrot.lane.b32.xlu0 %v819, 120
      %v970 = vpop.permute.xlu0 %969
      %972 = vxpose.xlu0.c.b16.start [1/8] %v970, 128
      %973 = vxpose.xlu0.c.b16.cont [2/8] 0, 128
      %974 = vxpose.xlu0.c.b16.cont [3/8] 0, 128
      %975 = vxpose.xlu0.c.b16.cont [4/8] 0, 128
      %976 = vxpose.xlu0.c.b16.cont [5/8] 0, 128
      %977 = vxpose.xlu0.c.b16.cont [6/8] 0, 128
      %978 = vxpose.xlu0.c.b16.cont [7/8] 0, 128
      %979 = vxpose.xlu0.c.b16.end [8/8] 0, 128
      %v980 = vpop.trf.xlu0
      %v981 = vpop.trf.xlu0
      %v982 = vpop.trf.xlu0
      %v983 = vpop.trf.xlu0
      %v984 = vpop.trf.xlu0
      %v985 = vpop.trf.xlu0
      %v986 = vpop.trf.xlu0
      %v987 = vpop.trf.xlu0
      %988 = vrot.lane.b32.xlu0 %v537, 48
      %v989 = vpop.permute.xlu0 %988
      %v991 = vsel %vm624, %v980, 0
      %v994 = vsel %vm628, %v989, 0
      %996 = vmatpush.bf16.msra.mxu0 0
      %997 = vmatpush.bf16.msra.mxu0 0
      %998 = vmatpush.bf16.msra.mxu0 0
      %999 = vmatpush.bf16.msra.mxu0 0
      %1000 = vmatpush.bf16.msra.mxu0 0
      %1001 = vmatpush.bf16.msra.mxu0 0
      %1002 = vmatpush.bf16.msra.mxu0 0
      %1003 = vmatpush.bf16.msra.mxu0 %v994
      %1004 = vmatmul.bf16.gmra.mxu0 %v991
      %v1005 = vpop.f32.mrf.mxu0
      %v1006 = vadd.f32 0.0, %v1005
      %v1007 = vpop.f32.mrf.mxu0
      %1008 = vdwg.mxu0
      %v1009 = vpack.c.bf16 %v1006, %v1006
      %v1010 = vsel %vm704, %v968, -inf
      %1011 = vmax.xlane.f32.xlu0 %v1010
      %v1012 = vpop.xlane.xlu0 %1011
      %v1013 = vsub.f32 %v968, %v1012
      %v1014 = vmul.f32 %v1013, 1.442695
      %v1015 = vpow.pop %v1014
      %v1016 = vsel %vm704, %v1015, 0.0
      %1017 = vadd.xlane.f32.xlu0 %v1016
      %v1018 = vpop.xlane.xlu0 %1017
      %v1019 = vrcp.pop %v1018
      %v1020 = vmul.f32 %v1018, %v1019
      %v1021 = vsub.f32 1.0, %v1020
      %v1022 = vmul.f32 %v1019, %v1021
      %v1023 = vadd.f32 %v1019, %v1022
      %vm1024 = vweird.f32 %v1018
      %vm1025 = vweird.f32 %v1019
      %vm1026 = vmor %vm1024, %vm1025
      %v1027 = vsel %vm1026, %v1019, %v1023
      %v1028 = vand.u32 2147483647, %v1018
      %vm1029 = vcmp.eq.f32.partialorder %v1028, 8.507059e+37
      %v1030 = vand.u32 %v1018, 2147483648
      %v1031 = vor.u32 1.1754944e-38, %v1030
      %v1032 = vsel %vm1029, %v1031, %v1027
      %v1033 = vmul.f32 %v1015, %v1032
      %v1034 = vpack.c.bf16 %v1033, %v1033
      %v1036 = vsel %vm704, %v1034, 0
      %v1039 = vsel %vm733, %v1009, 0
      %1041 = vmatpush.bf16.msra.mxu0 0
      %1042 = vmatpush.bf16.msra.mxu0 0
      %1043 = vmatpush.bf16.msra.mxu0 0
      %1044 = vmatpush.bf16.msra.mxu0 0
      %1045 = vmatpush.bf16.msra.mxu0 0
      %1046 = vmatpush.bf16.msra.mxu0 0
      %1047 = vmatpush.bf16.msra.mxu0 0
      %1048 = vmatpush.bf16.msra.mxu0 %v1039
      %1049 = vmatmul.bf16.gmra.mxu0 %v1036
      %v1050 = vpop.f32.mrf.mxu0
      %v1051 = vadd.f32 0.0, %v1050
      %v1052 = vpop.f32.mrf.mxu0
      %1053 = vdwg.mxu0
      %1054 = vrot.lane.b32.xlu0 %v752, 116
      %v1055 = vpop.permute.xlu0 %1054
      %1057 = vxpose.xlu0.c.b16.start [1/8] %v1055, 128
      %1058 = vxpose.xlu0.c.b16.cont [2/8] 0, 128
      %1059 = vxpose.xlu0.c.b16.cont [3/8] 0, 128
      %1060 = vxpose.xlu0.c.b16.cont [4/8] 0, 128
      %1061 = vxpose.xlu0.c.b16.cont [5/8] 0, 128
      %1062 = vxpose.xlu0.c.b16.cont [6/8] 0, 128
      %1063 = vxpose.xlu0.c.b16.cont [7/8] 0, 128
      %1064 = vxpose.xlu0.c.b16.end [8/8] 0, 128
      %v1065 = vpop.trf.xlu0
      %v1066 = vpop.trf.xlu0
      %v1067 = vpop.trf.xlu0
      %v1068 = vpop.trf.xlu0
      %v1069 = vpop.trf.xlu0
      %v1070 = vpop.trf.xlu0
      %v1071 = vpop.trf.xlu0
      %v1072 = vpop.trf.xlu0
      %1073 = vrot.lane.b32.xlu0 %v537, 72
      %v1074 = vpop.permute.xlu0 %1073
      %v1076 = vsel %vm624, %v1065, 0
      %v1079 = vsel %vm628, %v1074, 0
      %1081 = vmatpush.bf16.msra.mxu0 0
      %1082 = vmatpush.bf16.msra.mxu0 0
      %1083 = vmatpush.bf16.msra.mxu0 0
      %1084 = vmatpush.bf16.msra.mxu0 0
      %1085 = vmatpush.bf16.msra.mxu0 0
      %1086 = vmatpush.bf16.msra.mxu0 0
      %1087 = vmatpush.bf16.msra.mxu0 0
      %1088 = vmatpush.bf16.msra.mxu0 %v1079
      %1089 = vmatmul.bf16.gmra.mxu0 %v1076
      %v1090 = vpop.f32.mrf.mxu0
      %v1091 = vadd.f32 0.0, %v1090
      %v1092 = vpop.f32.mrf.mxu0
      %1093 = vdwg.mxu0
      %v1094 = vpack.c.bf16 %v1091, %v1091
      %1095 = vrot.lane.b32.xlu0 %v537, 104
      %v1096 = vpop.permute.xlu0 %1095
      %v1098 = vsel %vm624, %v1096, 0
      %v1101 = vsel %vm624, %v1094, 0
      %1103 = vmatpush.bf16.xpose.msra.mxu0 0
      %1104 = vmatpush.bf16.xpose.msra.mxu0 0
      %1105 = vmatpush.bf16.xpose.msra.mxu0 0
      %1106 = vmatpush.bf16.xpose.msra.mxu0 0
      %1107 = vmatpush.bf16.xpose.msra.mxu0 0
      %1108 = vmatpush.bf16.xpose.msra.mxu0 0
      %1109 = vmatpush.bf16.xpose.msra.mxu0 0
      %1110 = vmatpush.bf16.xpose.msra.mxu0 %v1101
      %1111 = vmatmul.bf16.gmra.mxu0 %v1098
      %v1112 = vpop.f32.mrf.mxu0
      %v1113 = vadd.f32 0.0, %v1112
      %v1114 = vpop.f32.mrf.mxu0
      %1115 = vdwg.mxu0
      %v1116 = vmul.f32 %v1113, 0.35355338
      %v1117 = vadd.f32 %v1116, %v666
      %1118 = vrot.lane.b32.xlu0 %v819, 116
      %v1119 = vpop.permute.xlu0 %1118
      %1121 = vxpose.xlu0.c.b16.start [1/8] %v1119, 128
      %1122 = vxpose.xlu0.c.b16.cont [2/8] 0, 128
      %1123 = vxpose.xlu0.c.b16.cont [3/8] 0, 128
      %1124 = vxpose.xlu0.c.b16.cont [4/8] 0, 128
      %1125 = vxpose.xlu0.c.b16.cont [5/8] 0, 128
      %1126 = vxpose.xlu0.c.b16.cont [6/8] 0, 128
      %1127 = vxpose.xlu0.c.b16.cont [7/8] 0, 128
      %1128 = vxpose.xlu0.c.b16.end [8/8] 0, 128
      %v1129 = vpop.trf.xlu0
      %v1130 = vpop.trf.xlu0
      %v1131 = vpop.trf.xlu0
      %v1132 = vpop.trf.xlu0
      %v1133 = vpop.trf.xlu0
      %v1134 = vpop.trf.xlu0
      %v1135 = vpop.trf.xlu0
      %v1136 = vpop.trf.xlu0
      %1137 = vrot.lane.b32.xlu0 %v537, 40
      %v1138 = vpop.permute.xlu0 %1137
      %v1140 = vsel %vm624, %v1129, 0
      %v1143 = vsel %vm628, %v1138, 0
      %1145 = vmatpush.bf16.msra.mxu0 0
      %1146 = vmatpush.bf16.msra.mxu0 0
      %1147 = vmatpush.bf16.msra.mxu0 0
      %1148 = vmatpush.bf16.msra.mxu0 0
      %1149 = vmatpush.bf16.msra.mxu0 0
      %1150 = vmatpush.bf16.msra.mxu0 0
      %1151 = vmatpush.bf16.msra.mxu0 0
      %1152 = vmatpush.bf16.msra.mxu0 %v1143
      %1153 = vmatmul.bf16.gmra.mxu0 %v1140
      %v1154 = vpop.f32.mrf.mxu0
      %v1155 = vadd.f32 0.0, %v1154
      %v1156 = vpop.f32.mrf.mxu0
      %1157 = vdwg.mxu0
      %v1158 = vpack.c.bf16 %v1155, %v1155
      %v1159 = vsel %vm704, %v1117, -inf
      %1160 = vmax.xlane.f32.xlu0 %v1159
      %v1161 = vpop.xlane.xlu0 %1160
      %v1162 = vsub.f32 %v1117, %v1161
      %v1163 = vmul.f32 %v1162, 1.442695
      %v1164 = vpow.pop %v1163
      %v1165 = vsel %vm704, %v1164, 0.0
      %1166 = vadd.xlane.f32.xlu0 %v1165
      %v1167 = vpop.xlane.xlu0 %1166
      %v1168 = vrcp.pop %v1167
      %v1169 = vmul.f32 %v1167, %v1168
      %v1170 = vsub.f32 1.0, %v1169
      %v1171 = vmul.f32 %v1168, %v1170
      %v1172 = vadd.f32 %v1168, %v1171
      %vm1173 = vweird.f32 %v1167
      %vm1174 = vweird.f32 %v1168
      %vm1175 = vmor %vm1173, %vm1174
      %v1176 = vsel %vm1175, %v1168, %v1172
      %v1177 = vand.u32 2147483647, %v1167
      %vm1178 = vcmp.eq.f32.partialorder %v1177, 8.507059e+37
      %v1179 = vand.u32 %v1167, 2147483648
      %v1180 = vor.u32 1.1754944e-38, %v1179
      %v1181 = vsel %vm1178, %v1180, %v1176
      %v1182 = vmul.f32 %v1164, %v1181
      %v1183 = vpack.c.bf16 %v1182, %v1182
      %v1185 = vsel %vm704, %v1183, 0
      %v1188 = vsel %vm733, %v1158, 0
      %1190 = vmatpush.bf16.msra.mxu0 0
      %1191 = vmatpush.bf16.msra.mxu0 0
      %1192 = vmatpush.bf16.msra.mxu0 0
      %1193 = vmatpush.bf16.msra.mxu0 0
      %1194 = vmatpush.bf16.msra.mxu0 0
      %1195 = vmatpush.bf16.msra.mxu0 0
      %1196 = vmatpush.bf16.msra.mxu0 0
      %1197 = vmatpush.bf16.msra.mxu0 %v1188
      %1198 = vmatmul.bf16.gmra.mxu0 %v1185
      %v1199 = vpop.f32.mrf.mxu0
      %v1200 = vadd.f32 0.0, %v1199
      %v1201 = vpop.f32.mrf.mxu0
      %1202 = vdwg.mxu0
      %1204 = vrot.lane.b32.xlu0 %v902, 8
      %v1205 = vpop.permute.xlu0 %1204
      %1208 = vrot.lane.b32.xlu0 %v1051, 16
      %v1209 = vpop.permute.xlu0 %1208
      %1212 = vrot.lane.b32.xlu0 %v1200, 24
      %v1213 = vpop.permute.xlu0 %1212
      %v1215 = vsel %vm624, %v747, %v1205
      %vm1216 = vcmask 130048
      %v1217 = vsel %vm1216, %v1215, %v1209
      %vm1218 = vcmask 195584
      %v1219 = vsel %vm1218, %v1217, %v1213
      %v1220 = vpack.c.bf16 %v1219, %v1219
      %v1221 = vld [vmem:[%s9] sm:$0xf]
      %v1222 = vld [vmem:[%s9 + $0x4] sm:$0xf]
      %v1223 = vld [vmem:[%s9 + $0x8] sm:$0xf]
      %v1224 = vld [vmem:[%s9 + $0xc] sm:$0xf]
      %v1225 = vld [vmem:[%s10] sm:$0x1]
      %v1227 = vperm.slane %v1225, 0
      %v1233 = vunpack.c.l.b16 %v1221
      %v1234 = vunpack.c.l.b16 %v1222
      %v1235 = vunpack.c.l.b16 %v1223
      %v1236 = vunpack.c.l.b16 %v1224
      %v1237 = vpack.c.b16 %v1234, %v1233
      %v1238 = vpack.c.b16 %v1236, %v1235
      %v1242 = vsel %vm427, %v1220, 0
      %1244 = vmatpush.bf16.msra.mxu0 0
      %1245 = vmatpush.bf16.msra.mxu0 0
      %1246 = vmatpush.bf16.msra.mxu0 0
      %1247 = vmatpush.bf16.msra.mxu0 0
      %1248 = vmatpush.bf16.msra.mxu0 0
      %1249 = vmatpush.bf16.msra.mxu0 0
      %1250 = vmatpush.bf16.msra.mxu0 %v1238
      %1251 = vmatpush.bf16.msra.mxu0 %v1237
      %1252 = vmatmul.bf16.gmra.mxu0 %v1242
      %v1253 = vpop.f32.mrf.mxu0
      %v1254 = vadd.f32 %v1227, %v1253
      %v1255 = vpop.f32.mrf.mxu0
      %1256 = vdwg.mxu0
      %v1257 = vadd.f32 %v424, %v1254
      %1258 = vst.msk [vmem:[%s422] sm:$0xff] %vm427, %v1257
      %p1259 = scmp.lt.s32.totalorder %s23, 1
      %s1260 = scalar_select %p1259, %s23, 1
      %s1261 = smul.addr %s1260, 8
      %s1262 = scalar_lea.vmem %s12, %s1261
      // Predicated region
      $region69: #{linformer_encoder_forward.5} parent=67 // pred_check
        %p1263 = pneg %p303
      $region70: #{linformer_encoder_forward.5} parent=67 // pred_check_branch
        %1265 = sbr.rel (%p1263) target = $region72
      $region71: #{linformer_encoder_forward.5} parent=67 // pred_region
        _
      $region72: #{linformer_encoder_forward.5} parent=67 // pred_fallthru
        _
    $region68: #{linformer_encoder_forward.5} parent=5 // pred_fallthru
      _
    %p1266 = scmp.le.s32.totalorder 2, %s18
    // Predicated region
    $region73: #{linformer_encoder_forward.5} parent=5 // pred_check
      %p1267 = pneg %p1266
    $region74: #{linformer_encoder_forward.5} parent=5 // pred_check_branch
      %1269 = sbr.rel (%p1267) target = $region76
    $region75: #{linformer_encoder_forward.5} parent=5 // pred_region
      %s1270 = ssub.s32 %s18, 2
      // Predicated region
      $region77: #{linformer_encoder_forward.5} parent=75 // pred_check
        %p1271 = pneg %p309
      $region78: #{linformer_encoder_forward.5} parent=75 // pred_check_branch
        %1273 = sbr.rel (%p1271) target = $region80
      $region79: #{linformer_encoder_forward.5} parent=75 // pred_region
        %p1274 = scmp.lt.s32.totalorder %s24, 1
        %s1275 = scalar_select %p1274, %s24, 1
        %s1276 = smul.addr %s1275, 8
        %s1277 = scalar_lea.vmem %s12, %s1276
      $region80: #{linformer_encoder_forward.5} parent=75 // pred_fallthru
        _
    $region76: #{linformer_encoder_forward.5} parent=5 // pred_fallthru
      _
  $region6: #{linformer_encoder_forward.5} parent=0 // loop_footer
    %s22 = sadd.s32 1, %s18
  $region7: #{linformer_encoder_forward.5} parent=0 // loop_footer_branch
    %17 = sbr.rel target = $region3
  $region8: #{linformer_encoder_forward.5} parent=0 // loop_exit
    _

</llo_original>
